<compile_context>
chip_gen: v6e
topology: v6e:2x2x1
jax: 0.10.0
libtpu: 0.0.40
codegen_flags: <defaults>
</compile_context>

<pallas_src>
import jax
import jax.numpy as jnp
from jax.experimental import pallas as pl
from jax.experimental.pallas import tpu as pltpu


def _round_up(x, m):
    return ((x + m - 1) // m) * m


def merge_kernel(node_ref, t1_ref, t2_ref, wm_ref, bm_ref, wg_ref, bg_ref, o_ref):
    E = node_ref.shape[1]
    H = t1_ref.shape[1]

    node = node_ref[...]
    t1 = t1_ref[...]
    t2 = t2_ref[...]

    def proj(w_ref, b_ref):
        # Split-dot over static, sublane-aligned weight-row slices instead of
        # concatenating activations:  node @ W[0:E] + t1 @ W[E:E+H] + t2 @ W[E+H:].
        acc = jnp.dot(node, w_ref[0:E, :], preferred_element_type=jnp.float32)
        acc = acc + jnp.dot(t1, w_ref[E:E + H, :], preferred_element_type=jnp.float32)
        acc = acc + jnp.dot(t2, w_ref[E + H:E + 2 * H, :], preferred_element_type=jnp.float32)
        return acc + b_ref[...].astype(jnp.float32)   # single broadcast bias add

    h = jnp.tanh(proj(wm_ref, bm_ref))         # merge   gate (EUP)
    g = jax.nn.sigmoid(proj(wg_ref, bg_ref))   # merge_g gate (EUP)
    o_ref[...] = (h * g).astype(o_ref.dtype)


def _xla_forward(node, t1, t2, wm_t, b_m, wg_t, b_g, out_dtype):
    # Small-B / unaligned-shape fallback: XLA's fused matmul+elementwise.
    x = jnp.concatenate([node, t1, t2], axis=1)
    h = jnp.tanh(jnp.dot(x, wm_t.astype(x.dtype),
                         preferred_element_type=jnp.float32) + b_m.astype(jnp.float32))
    g = jax.nn.sigmoid(jnp.dot(x, wg_t.astype(x.dtype),
                               preferred_element_type=jnp.float32) + b_g.astype(jnp.float32))
    return (h * g).astype(out_dtype)


_SMALL_B = 64  # below this, pallas_call launch + a single tiny grid step can't win


def merge_forward(node_embedding, sub_tree_1, sub_tree_2, wm_t, b_m, wg_t, b_g,
                  *, block_rows=1024):
    """Merge.forward.

    node_embedding: [B, E]; sub_tree_*: [B, H]   (all same dtype; f32 or bf16)
    wm_t / wg_t:    [Din, H]  (pre-transposed torch Linear weights, Din = 2H+E)
    b_m / b_g:      [H] or [1, H]
    """
    B, E = node_embedding.shape
    H = sub_tree_1.shape[1]
    Din = 2 * H + E
    assert sub_tree_2.shape == (B, H)
    assert wm_t.shape == (Din, H) and wg_t.shape == (Din, H)

    act_dtype = node_embedding.dtype
    assert sub_tree_1.dtype == act_dtype and sub_tree_2.dtype == act_dtype

    b_m2 = jnp.reshape(b_m, (1, H)).astype(jnp.float32)
    b_g2 = jnp.reshape(b_g, (1, H)).astype(jnp.float32)

    # Guard the zero-cost weight-slice assumption: E, H multiples of the
    # sublane packing for the streaming dtype.  Otherwise (or for tiny B)
    # the plain XLA expression is as fast or faster.
    itemsize = jnp.dtype(act_dtype).itemsize
    pack = {4: 8, 2: 16, 1: 32}.get(itemsize, 8)
    aligned = (E % pack == 0) and (H % pack == 0)
    if B < _SMALL_B or not aligned:
        return _xla_forward(node_embedding, sub_tree_1, sub_tree_2,
                            wm_t, b_m2, wg_t, b_g2, act_dtype)

    # Weights streamed in the activation dtype (constant-folds under jit).
    wm = wm_t.astype(act_dtype)
    wg = wg_t.astype(act_dtype)

    # Row-block selection:
    #  * as large as a conservative VMEM budget allows (double-buffered tiles),
    #  * capped at ~ceil(B/2) so the grid has >= 2 "parallel" steps (v7x 2 TCs),
    #  * multiple of 8; ragged B handled by a partial last block (no padding).
    per_row_bytes = (E + 3 * H) * itemsize * 2          # in-tiles + out-tile, x2 buffers
    vmem_budget = 16 * 1024 * 1024
    cap = max(8, (vmem_budget // per_row_bytes) // 8 * 8)
    rows = min(block_rows, cap, max(8, _round_up((B + 1) // 2, 8)))
    rows = max(8, (rows // 8) * 8)
    n_blocks = pl.cdiv(B, rows)

    out = pl.pallas_call(
        merge_kernel,
        out_shape=jax.ShapeDtypeStruct((B, H), act_dtype),
        grid=(n_blocks,),
        in_specs=[
            pl.BlockSpec((rows, E), lambda i: (i, 0)),   # node_embedding
            pl.BlockSpec((rows, H), lambda i: (i, 0)),   # sub_tree_1
            pl.BlockSpec((rows, H), lambda i: (i, 0)),   # sub_tree_2
            pl.BlockSpec((Din, H), lambda i: (0, 0)),    # merge weight   (VMEM-resident)
            pl.BlockSpec((1, H), lambda i: (0, 0)),      # merge bias     (VMEM-resident)
            pl.BlockSpec((Din, H), lambda i: (0, 0)),    # merge_g weight (VMEM-resident)
            pl.BlockSpec((1, H), lambda i: (0, 0)),      # merge_g bias   (VMEM-resident)
        ],
        out_specs=pl.BlockSpec((rows, H), lambda i: (i, 0)),
        compiler_params=pltpu.CompilerParams(
            dimension_semantics=("parallel",)),          # row-blocks shard across TCs
    )(node_embedding, sub_tree_1, sub_tree_2, wm, b_m2, wg, b_g2)
    return out


if __name__ == "__main__":
    H = 32           # hidden_size
    E = 32           # embedding_size
    Din = 2 * H + E  # concat feature dim = 96

    key = jax.random.PRNGKey(0)
    k_node, k_t1, k_t2, k_wm, k_bm, k_wg, k_bg = jax.random.split(key, 7)

    # Deterministic PyTorch-style Linear init: U(-1/sqrt(in), 1/sqrt(in)).
    bound = 1.0 / float(jnp.sqrt(jnp.float32(Din)))
    wm_t = jax.random.uniform(k_wm, (Din, H), jnp.float32, -bound, bound)
    b_m = jax.random.uniform(k_bm, (H,), jnp.float32, -bound, bound)
    wg_t = jax.random.uniform(k_wg, (Din, H), jnp.float32, -bound, bound)
    b_g = jax.random.uniform(k_bg, (H,), jnp.float32, -bound, bound)

    def _ref(node, t1, t2):
        x = jnp.concatenate([node.astype(jnp.float32), t1.astype(jnp.float32),
                             t2.astype(jnp.float32)], axis=1)
        return (jnp.tanh(x @ wm_t + b_m[None, :])
                * jax.nn.sigmoid(x @ wg_t + b_g[None, :]))

    def make_inputs(B, dtype=jnp.float32):
        n = jax.random.normal(k_node, (B, E), jnp.float32).astype(dtype)
        a = jax.random.normal(k_t1, (B, H), jnp.float32).astype(dtype)
        c = jax.random.normal(k_t2, (B, H), jnp.float32).astype(dtype)
        return n, a, c

    # Case 1: tiny batch -> XLA fast path (kernel launch not worth it).
    n1, a1, c1 = make_inputs(8)
    o1 = jax.block_until_ready(merge_forward(n1, a1, c1, wm_t, b_m, wg_t, b_g))
    assert o1.shape == (8, H)
    assert jnp.allclose(o1, _ref(n1, a1, c1), atol=1e-4, rtol=1e-4)

    # Case 2: ragged batch -> kernel, 2 row-blocks, partial last block (no padding).
    n2, a2, c2 = make_inputs(203)
    o2 = jax.block_until_ready(merge_forward(n2, a2, c2, wm_t, b_m, wg_t, b_g))
    assert o2.shape == (203, H)
    assert jnp.allclose(o2, _ref(n2, a2, c2), atol=1e-4, rtol=1e-4)

    # Case 3: larger batch -> kernel, rows=1024, 3 row-blocks, resident weights.
    n3, a3, c3 = make_inputs(2600)
    o3 = jax.block_until_ready(merge_forward(n3, a3, c3, wm_t, b_m, wg_t, b_g))
    assert o3.shape == (2600, H)
    assert jnp.allclose(o3, _ref(n3, a3, c3), atol=1e-4, rtol=1e-4)

    # Case 4: bf16 activation streaming (halves HBM bytes; f32 accumulation kept).
    n4, a4, c4 = make_inputs(203, jnp.bfloat16)
    o4 = jax.block_until_ready(merge_forward(n4, a4, c4, wm_t, b_m, wg_t, b_g))
    assert o4.shape == (203, H) and o4.dtype == jnp.bfloat16
    assert jnp.allclose(o4.astype(jnp.float32), _ref(n4, a4, c4), atol=3e-2, rtol=3e-2)

    print("KERNEL_OK")
</pallas_src>

<mosaic_0001>
module attributes {stable_mosaic.version = 11 : i64} {
  func.func @merge_kernel(%arg0: i32, %arg1: memref<104x32xf32, #tpu.memory_space<vmem>>, %arg2: memref<104x32xf32, #tpu.memory_space<vmem>>, %arg3: memref<104x32xf32, #tpu.memory_space<vmem>>, %arg4: memref<96x32xf32, #tpu.memory_space<vmem>>, %arg5: memref<1x32xf32, #tpu.memory_space<vmem>>, %arg6: memref<96x32xf32, #tpu.memory_space<vmem>>, %arg7: memref<1x32xf32, #tpu.memory_space<vmem>>, %arg8: memref<104x32xf32, #tpu.memory_space<vmem>>) attributes {dimension_semantics = [#tpu.dimension_semantics<parallel>], iteration_bounds = array<i64: 2>, scalar_prefetch = 0 : i64, scratch_operands = 0 : i64, tpu.core_type = #tpu.core_type<tc>, window_params = [{transform_indices = @transform_0, window_bounds = array<i64: 104, 32>}, {transform_indices = @transform_1, window_bounds = array<i64: 104, 32>}, {transform_indices = @transform_2, window_bounds = array<i64: 104, 32>}, {pipeline_mode = #tpu.pipeline_mode<synchronous>, transform_indices = @transform_3, window_bounds = array<i64: 96, 32>}, {pipeline_mode = #tpu.pipeline_mode<synchronous>, transform_indices = @transform_4, window_bounds = array<i64: 1, 32>}, {pipeline_mode = #tpu.pipeline_mode<synchronous>, transform_indices = @transform_5, window_bounds = array<i64: 96, 32>}, {pipeline_mode = #tpu.pipeline_mode<synchronous>, transform_indices = @transform_6, window_bounds = array<i64: 1, 32>}, {transform_indices = @transform_7, window_bounds = array<i64: 104, 32>}]} {
    %c0 = arith.constant 0 : index
    %c0_0 = arith.constant 0 : index
    %0 = vector.load %arg1[%c0, %c0_0] : memref<104x32xf32, #tpu.memory_space<vmem>>, vector<104x32xf32>
    %c0_1 = arith.constant 0 : index
    %c0_2 = arith.constant 0 : index
    %1 = vector.load %arg2[%c0_1, %c0_2] : memref<104x32xf32, #tpu.memory_space<vmem>>, vector<104x32xf32>
    %c0_3 = arith.constant 0 : index
    %c0_4 = arith.constant 0 : index
    %2 = vector.load %arg3[%c0_3, %c0_4] : memref<104x32xf32, #tpu.memory_space<vmem>>, vector<104x32xf32>
    %c0_5 = arith.constant 0 : index
    %c0_6 = arith.constant 0 : index
    %3 = vector.load %arg4[%c0_5, %c0_6] : memref<96x32xf32, #tpu.memory_space<vmem>>, vector<32x32xf32>
    %cst = arith.constant dense<0.000000e+00> : vector<104x32xf32>
    %4 = tpu.matmul %0, %3, %cst {dimension_numbers = #tpu.dot_dimension_numbers<[1], [0], [0], [1], [0, 0, 1, 1], [], []>} : vector<104x32xf32>, vector<32x32xf32>, vector<104x32xf32> -> vector<104x32xf32>
    %c32 = arith.constant 32 : index
    %c0_7 = arith.constant 0 : index
    %5 = vector.load %arg4[%c32, %c0_7] : memref<96x32xf32, #tpu.memory_space<vmem>>, vector<32x32xf32>
    %cst_8 = arith.constant dense<0.000000e+00> : vector<104x32xf32>
    %6 = tpu.matmul %1, %5, %cst_8 {dimension_numbers = #tpu.dot_dimension_numbers<[1], [0], [0], [1], [0, 0, 1, 1], [], []>} : vector<104x32xf32>, vector<32x32xf32>, vector<104x32xf32> -> vector<104x32xf32>
    %7 = arith.addf %4, %6 : vector<104x32xf32>
    %c64 = arith.constant 64 : index
    %c0_9 = arith.constant 0 : index
    %8 = vector.load %arg4[%c64, %c0_9] : memref<96x32xf32, #tpu.memory_space<vmem>>, vector<32x32xf32>
    %cst_10 = arith.constant dense<0.000000e+00> : vector<104x32xf32>
    %9 = tpu.matmul %2, %8, %cst_10 {dimension_numbers = #tpu.dot_dimension_numbers<[1], [0], [0], [1], [0, 0, 1, 1], [], []>} : vector<104x32xf32>, vector<32x32xf32>, vector<104x32xf32> -> vector<104x32xf32>
    %10 = arith.addf %7, %9 : vector<104x32xf32>
    %c0_11 = arith.constant 0 : index
    %c0_12 = arith.constant 0 : index
    %11 = vector.load %arg5[%c0_11, %c0_12] : memref<1x32xf32, #tpu.memory_space<vmem>>, vector<1x32xf32>
    %12 = vector.broadcast %11 : vector<1x32xf32> to vector<104x32xf32>
    %13 = arith.addf %10, %12 : vector<104x32xf32>
    %14 = math.tanh %13 : vector<104x32xf32>
    %c0_13 = arith.constant 0 : index
    %c0_14 = arith.constant 0 : index
    %15 = vector.load %arg6[%c0_13, %c0_14] : memref<96x32xf32, #tpu.memory_space<vmem>>, vector<32x32xf32>
    %cst_15 = arith.constant dense<0.000000e+00> : vector<104x32xf32>
    %16 = tpu.matmul %0, %15, %cst_15 {dimension_numbers = #tpu.dot_dimension_numbers<[1], [0], [0], [1], [0, 0, 1, 1], [], []>} : vector<104x32xf32>, vector<32x32xf32>, vector<104x32xf32> -> vector<104x32xf32>
    %c32_16 = arith.constant 32 : index
    %c0_17 = arith.constant 0 : index
    %17 = vector.load %arg6[%c32_16, %c0_17] : memref<96x32xf32, #tpu.memory_space<vmem>>, vector<32x32xf32>
    %cst_18 = arith.constant dense<0.000000e+00> : vector<104x32xf32>
    %18 = tpu.matmul %1, %17, %cst_18 {dimension_numbers = #tpu.dot_dimension_numbers<[1], [0], [0], [1], [0, 0, 1, 1], [], []>} : vector<104x32xf32>, vector<32x32xf32>, vector<104x32xf32> -> vector<104x32xf32>
    %19 = arith.addf %16, %18 : vector<104x32xf32>
    %c64_19 = arith.constant 64 : index
    %c0_20 = arith.constant 0 : index
    %20 = vector.load %arg6[%c64_19, %c0_20] : memref<96x32xf32, #tpu.memory_space<vmem>>, vector<32x32xf32>
    %cst_21 = arith.constant dense<0.000000e+00> : vector<104x32xf32>
    %21 = tpu.matmul %2, %20, %cst_21 {dimension_numbers = #tpu.dot_dimension_numbers<[1], [0], [0], [1], [0, 0, 1, 1], [], []>} : vector<104x32xf32>, vector<32x32xf32>, vector<104x32xf32> -> vector<104x32xf32>
    %22 = arith.addf %19, %21 : vector<104x32xf32>
    %c0_22 = arith.constant 0 : index
    %c0_23 = arith.constant 0 : index
    %23 = vector.load %arg7[%c0_22, %c0_23] : memref<1x32xf32, #tpu.memory_space<vmem>>, vector<1x32xf32>
    %24 = vector.broadcast %23 : vector<1x32xf32> to vector<104x32xf32>
    %25 = arith.addf %22, %24 : vector<104x32xf32>
    %26 = arith.negf %25 : vector<104x32xf32>
    %27 = math.exp %26 : vector<104x32xf32>
    %cst_24 = arith.constant 1.000000e+00 : f32
    %28 = vector.broadcast %cst_24 : f32 to vector<104x32xf32>
    %29 = arith.addf %28, %27 : vector<104x32xf32>
    %30 = arith.divf %28, %29 : vector<104x32xf32>
    %31 = arith.mulf %14, %30 : vector<104x32xf32>
    %c0_25 = arith.constant 0 : index
    %c0_26 = arith.constant 0 : index
    %32 = vector.load %arg8[%c0_25, %c0_26] : memref<104x32xf32, #tpu.memory_space<vmem>>, vector<104x32xf32>
    tpu.vector_store %arg8[%c0_25, %c0_26], %31 {strides = array<i32>} : memref<104x32xf32, #tpu.memory_space<vmem>>, vector<104x32xf32>,
    return
  }
  func.func @transform_0(%arg0: i32) -> (i32, i32) {
    %c0_i32 = arith.constant 0 : i32
    %c0_i32_0 = arith.constant 0 : i32
    return %arg0, %c0_i32 : i32, i32
  }
  func.func @transform_1(%arg0: i32) -> (i32, i32) {
    %c0_i32 = arith.constant 0 : i32
    %c0_i32_0 = arith.constant 0 : i32
    return %arg0, %c0_i32 : i32, i32
  }
  func.func @transform_2(%arg0: i32) -> (i32, i32) {
    %c0_i32 = arith.constant 0 : i32
    %c0_i32_0 = arith.constant 0 : i32
    return %arg0, %c0_i32 : i32, i32
  }
  func.func @transform_3(%arg0: i32) -> (i32, i32) {
    %c0_i32 = arith.constant 0 : i32
    %c0_i32_0 = arith.constant 0 : i32
    %c0_i32_1 = arith.constant 0 : i32
    return %c0_i32, %c0_i32_0 : i32, i32
  }
  func.func @transform_4(%arg0: i32) -> (i32, i32) {
    %c0_i32 = arith.constant 0 : i32
    %c0_i32_0 = arith.constant 0 : i32
    %c0_i32_1 = arith.constant 0 : i32
    return %c0_i32, %c0_i32_0 : i32, i32
  }
  func.func @transform_5(%arg0: i32) -> (i32, i32) {
    %c0_i32 = arith.constant 0 : i32
    %c0_i32_0 = arith.constant 0 : i32
    %c0_i32_1 = arith.constant 0 : i32
    return %c0_i32, %c0_i32_0 : i32, i32
  }
  func.func @transform_6(%arg0: i32) -> (i32, i32) {
    %c0_i32 = arith.constant 0 : i32
    %c0_i32_0 = arith.constant 0 : i32
    %c0_i32_1 = arith.constant 0 : i32
    return %c0_i32, %c0_i32_0 : i32, i32
  }
  func.func @transform_7(%arg0: i32) -> (i32, i32) {
    %c0_i32 = arith.constant 0 : i32
    %c0_i32_0 = arith.constant 0 : i32
    return %arg0, %c0_i32 : i32, i32
  }
}

</mosaic_0001>

<llo_original>
// kernel: tpu_custom_call.1
$region0: #{tpu_custom_call.1}
  #allocation0 [shape = 'u32[]', space=smem, size = 0x4, offset = 0x4, fixed_abs, tag = 'smem constant byte address 0x4 - core index']
  #allocation1 [shape = 'u32[144,128]{1,0:T(1,128)}', space=vmem, size = 0x12000, scoped, tag = 'internal scratch']
  %s0 = inlined_call_operand.vmem [shape: f32[203,32], index: 0, kind: input, shape index: {}]
  %s1 = inlined_call_operand.vmem [shape: f32[203,32], index: 1, kind: input, shape index: {}]
  %s2 = inlined_call_operand.vmem [shape: f32[203,32], index: 2, kind: input, shape index: {}]
  %s3 = inlined_call_operand.vmem [shape: f32[96,32], index: 3, kind: input, shape index: {}]
  %s4 = inlined_call_operand.vmem [shape: f32[1,32], index: 4, kind: input, shape index: {}]
  %s5 = inlined_call_operand.vmem [shape: f32[96,32], index: 5, kind: input, shape index: {}]
  %s6 = inlined_call_operand.vmem [shape: f32[1,32], index: 6, kind: input, shape index: {}]
  %s7 = inlined_call_operand.vmem [shape: f32[203,32], index: 7, kind: output, shape index: {}]
  %s8 = sld [smem:[#allocation0]]
  $region61: #{tpu_custom_call.1} parent=0
    _
  %s10 = ssub.s32 1, %s8
  %s11 = scalar_select 0, %s10, %s8
  loop: start=0, step=1, limit=4
  $region2: #{tpu_custom_call.1} parent=0 // loop_pre_header
    _
  $region3: #{tpu_custom_call.1} parent=0 // loop_header
    %s13 = sphi 0, %s17
    %p14 = scmp.ge.s32.totalorder %s13, 4
    %s23 = sphi 0, %s25
    %s26 = sphi 0, %s23
    %s27 = sphi 0, %s26
    %s43 = sphi 0, %s27
    %s49 = sphi 0, %s51
    %s52 = sphi 0, %s49
    %s53 = sphi 0, %s52
    %s69 = sphi 0, %s53
    %s75 = sphi 0, %s77
    %s78 = sphi 0, %s75
    %s79 = sphi 0, %s78
    %s95 = sphi 0, %s79
    %s99 = sphi 0, %s99
    %s101 = sphi 0, %s99
    %s102 = sphi 0, %s101
    %s116 = sphi 0, %s102
    %s120 = sphi 0, %s120
    %s122 = sphi 0, %s120
    %s123 = sphi 0, %s122
    %s137 = sphi 0, %s123
    %s141 = sphi 0, %s141
    %s143 = sphi 0, %s141
    %s144 = sphi 0, %s143
    %s158 = sphi 0, %s144
    %s162 = sphi 0, %s162
    %s164 = sphi 0, %s162
    %s165 = sphi 0, %s164
    %s179 = sphi 0, %s165
    %s185 = sphi 0, %s187
    %s188 = sphi 0, %s185
    %s189 = sphi 0, %s188
    %s205 = sphi 0, %s189
  $region4: #{tpu_custom_call.1} parent=0 // loop_header_branch
    %16 = sbr.rel (%p14) target = $region8
  $region5: #{tpu_custom_call.1} parent=0 // loop_body
    %s18 = ssub.s32 %s13, 1
    %s19 = ssub.s32 %s13, 2
    %s20 = sadd.s32 %s13, 1
    %s21 = ssub.s32 %s13, %s20
    %p22 = scmp.eq.s32.totalorder %s21, 0
    %s24 = sadd.s32 %s23, 1
    %s25 = scalar_select %p22, %s23, %s24
    %p28 = pneg %p22
    %p29 = scmp.eq.s32.totalorder %s13, 1
    %p30 = por %p28, %p29
    %p31 = scmp.ne.s32.totalorder %s23, %s26
    %p32 = scmp.eq.s32.totalorder %s13, 0
    %p33 = por %p31, %p32
    %p34 = scmp.ne.s32.totalorder %s23, %s26
    %p35 = scmp.eq.s32.totalorder %s18, 1
    %p36 = por %p34, %p35
    %p37 = scmp.ne.s32.totalorder %s26, %s27
    %p38 = scmp.eq.s32.totalorder %s18, 0
    %p39 = por %p37, %p38
    %p40 = scmp.ne.s32.totalorder %s26, %s27
    %p41 = scmp.eq.s32.totalorder %s19, 1
    %p42 = por %p40, %p41
    %p44 = scmp.ne.s32.totalorder %s27, %s43
    %p45 = scmp.eq.s32.totalorder %s19, 0
    %p46 = por %p44, %p45
    %s47 = ssub.s32 %s13, %s20
    %p48 = scmp.eq.s32.totalorder %s47, 0
    %s50 = sadd.s32 %s49, 1
    %s51 = scalar_select %p48, %s49, %s50
    %p54 = pneg %p48
    %p55 = scmp.eq.s32.totalorder %s13, 1
    %p56 = por %p54, %p55
    %p57 = scmp.ne.s32.totalorder %s49, %s52
    %p58 = scmp.eq.s32.totalorder %s13, 0
    %p59 = por %p57, %p58
    %p60 = scmp.ne.s32.totalorder %s49, %s52
    %p61 = scmp.eq.s32.totalorder %s18, 1
    %p62 = por %p60, %p61
    %p63 = scmp.ne.s32.totalorder %s52, %s53
    %p64 = scmp.eq.s32.totalorder %s18, 0
    %p65 = por %p63, %p64
    %p66 = scmp.ne.s32.totalorder %s52, %s53
    %p67 = scmp.eq.s32.totalorder %s19, 1
    %p68 = por %p66, %p67
    %p70 = scmp.ne.s32.totalorder %s53, %s69
    %p71 = scmp.eq.s32.totalorder %s19, 0
    %p72 = por %p70, %p71
    %s73 = ssub.s32 %s13, %s20
    %p74 = scmp.eq.s32.totalorder %s73, 0
    %s76 = sadd.s32 %s75, 1
    %s77 = scalar_select %p74, %s75, %s76
    %p80 = pneg %p74
    %p81 = scmp.eq.s32.totalorder %s13, 1
    %p82 = por %p80, %p81
    %p83 = scmp.ne.s32.totalorder %s75, %s78
    %p84 = scmp.eq.s32.totalorder %s13, 0
    %p85 = por %p83, %p84
    %p86 = scmp.ne.s32.totalorder %s75, %s78
    %p87 = scmp.eq.s32.totalorder %s18, 1
    %p88 = por %p86, %p87
    %p89 = scmp.ne.s32.totalorder %s78, %s79
    %p90 = scmp.eq.s32.totalorder %s18, 0
    %p91 = por %p89, %p90
    %p92 = scmp.ne.s32.totalorder %s78, %s79
    %p93 = scmp.eq.s32.totalorder %s19, 1
    %p94 = por %p92, %p93
    %p96 = scmp.ne.s32.totalorder %s79, %s95
    %p97 = scmp.eq.s32.totalorder %s19, 0
    %p98 = por %p96, %p97
    %s100 = sadd.s32 %s99, 1
    %p103 = scmp.eq.s32.totalorder %s13, 1
    %p104 = scmp.ne.s32.totalorder %s99, %s101
    %p105 = scmp.eq.s32.totalorder %s13, 0
    %p106 = por %p104, %p105
    %p107 = scmp.ne.s32.totalorder %s99, %s101
    %p108 = scmp.eq.s32.totalorder %s18, 1
    %p109 = por %p107, %p108
    %p110 = scmp.ne.s32.totalorder %s101, %s102
    %p111 = scmp.eq.s32.totalorder %s18, 0
    %p112 = por %p110, %p111
    %p113 = scmp.ne.s32.totalorder %s101, %s102
    %p114 = scmp.eq.s32.totalorder %s19, 1
    %p115 = por %p113, %p114
    %p117 = scmp.ne.s32.totalorder %s102, %s116
    %p118 = scmp.eq.s32.totalorder %s19, 0
    %p119 = por %p117, %p118
    %s121 = sadd.s32 %s120, 1
    %p124 = scmp.eq.s32.totalorder %s13, 1
    %p125 = scmp.ne.s32.totalorder %s120, %s122
    %p126 = scmp.eq.s32.totalorder %s13, 0
    %p127 = por %p125, %p126
    %p128 = scmp.ne.s32.totalorder %s120, %s122
    %p129 = scmp.eq.s32.totalorder %s18, 1
    %p130 = por %p128, %p129
    %p131 = scmp.ne.s32.totalorder %s122, %s123
    %p132 = scmp.eq.s32.totalorder %s18, 0
    %p133 = por %p131, %p132
    %p134 = scmp.ne.s32.totalorder %s122, %s123
    %p135 = scmp.eq.s32.totalorder %s19, 1
    %p136 = por %p134, %p135
    %p138 = scmp.ne.s32.totalorder %s123, %s137
    %p139 = scmp.eq.s32.totalorder %s19, 0
    %p140 = por %p138, %p139
    %s142 = sadd.s32 %s141, 1
    %p145 = scmp.eq.s32.totalorder %s13, 1
    %p146 = scmp.ne.s32.totalorder %s141, %s143
    %p147 = scmp.eq.s32.totalorder %s13, 0
    %p148 = por %p146, %p147
    %p149 = scmp.ne.s32.totalorder %s141, %s143
    %p150 = scmp.eq.s32.totalorder %s18, 1
    %p151 = por %p149, %p150
    %p152 = scmp.ne.s32.totalorder %s143, %s144
    %p153 = scmp.eq.s32.totalorder %s18, 0
    %p154 = por %p152, %p153
    %p155 = scmp.ne.s32.totalorder %s143, %s144
    %p156 = scmp.eq.s32.totalorder %s19, 1
    %p157 = por %p155, %p156
    %p159 = scmp.ne.s32.totalorder %s144, %s158
    %p160 = scmp.eq.s32.totalorder %s19, 0
    %p161 = por %p159, %p160
    %s163 = sadd.s32 %s162, 1
    %p166 = scmp.eq.s32.totalorder %s13, 1
    %p167 = scmp.ne.s32.totalorder %s162, %s164
    %p168 = scmp.eq.s32.totalorder %s13, 0
    %p169 = por %p167, %p168
    %p170 = scmp.ne.s32.totalorder %s162, %s164
    %p171 = scmp.eq.s32.totalorder %s18, 1
    %p172 = por %p170, %p171
    %p173 = scmp.ne.s32.totalorder %s164, %s165
    %p174 = scmp.eq.s32.totalorder %s18, 0
    %p175 = por %p173, %p174
    %p176 = scmp.ne.s32.totalorder %s164, %s165
    %p177 = scmp.eq.s32.totalorder %s19, 1
    %p178 = por %p176, %p177
    %p180 = scmp.ne.s32.totalorder %s165, %s179
    %p181 = scmp.eq.s32.totalorder %s19, 0
    %p182 = por %p180, %p181
    %s183 = ssub.s32 %s13, %s20
    %p184 = scmp.eq.s32.totalorder %s183, 0
    %s186 = sadd.s32 %s185, 1
    %s187 = scalar_select %p184, %s185, %s186
    %p190 = pneg %p184
    %p191 = scmp.eq.s32.totalorder %s13, 1
    %p192 = por %p190, %p191
    %p193 = scmp.ne.s32.totalorder %s185, %s188
    %p194 = scmp.eq.s32.totalorder %s13, 0
    %p195 = por %p193, %p194
    %p196 = scmp.ne.s32.totalorder %s185, %s188
    %p197 = scmp.eq.s32.totalorder %s18, 1
    %p198 = por %p196, %p197
    %p199 = scmp.ne.s32.totalorder %s188, %s189
    %p200 = scmp.eq.s32.totalorder %s18, 0
    %p201 = por %p199, %p200
    %p202 = scmp.ne.s32.totalorder %s188, %s189
    %p203 = scmp.eq.s32.totalorder %s19, 1
    %p204 = por %p202, %p203
    %p206 = scmp.ne.s32.totalorder %s189, %s205
    %p207 = scmp.eq.s32.totalorder %s19, 0
    %p208 = por %p206, %p207
    %p209 = scmp.le.s32.totalorder 1, %s13
    %p210 = scmp.lt.s32.totalorder %s13, 3
    %p211 = pnand %p209, %p210
    %p212 = pneg %p211
    // Predicated region
    $region9: #{tpu_custom_call.1} parent=5 // pred_check
      _
    $region10: #{tpu_custom_call.1} parent=5 // pred_check_branch
      %214 = sbr.rel (%p211) target = $region12
    $region11: #{tpu_custom_call.1} parent=5 // pred_region
      %s215 = ssub.s32 %s13, 1
      // Predicated region
      $region13: #{tpu_custom_call.1} parent=11 // pred_check
        %p216 = pneg %p112
      $region14: #{tpu_custom_call.1} parent=11 // pred_check_branch
        %218 = sbr.rel (%p216) target = $region16
      $region15: #{tpu_custom_call.1} parent=11 // pred_region
        _
      $region16: #{tpu_custom_call.1} parent=11 // pred_fallthru
        _
      // Predicated region
      $region17: #{tpu_custom_call.1} parent=11 // pred_check
        %p219 = pneg %p133
      $region18: #{tpu_custom_call.1} parent=11 // pred_check_branch
        %221 = sbr.rel (%p219) target = $region20
      $region19: #{tpu_custom_call.1} parent=11 // pred_region
        _
      $region20: #{tpu_custom_call.1} parent=11 // pred_fallthru
        _
      // Predicated region
      $region21: #{tpu_custom_call.1} parent=11 // pred_check
        %p222 = pneg %p154
      $region22: #{tpu_custom_call.1} parent=11 // pred_check_branch
        %224 = sbr.rel (%p222) target = $region24
      $region23: #{tpu_custom_call.1} parent=11 // pred_region
        _
      $region24: #{tpu_custom_call.1} parent=11 // pred_fallthru
        _
      // Predicated region
      $region25: #{tpu_custom_call.1} parent=11 // pred_check
        %p225 = pneg %p175
      $region26: #{tpu_custom_call.1} parent=11 // pred_check_branch
        %227 = sbr.rel (%p225) target = $region28
      $region27: #{tpu_custom_call.1} parent=11 // pred_region
        _
      $region28: #{tpu_custom_call.1} parent=11 // pred_fallthru
        _
    $region12: #{tpu_custom_call.1} parent=5 // pred_fallthru
      _
    %p228 = scmp.lt.s32.totalorder %s13, 2
    // Predicated region
    $region29: #{tpu_custom_call.1} parent=5 // pred_check
      %p229 = pneg %p228
    $region30: #{tpu_custom_call.1} parent=5 // pred_check_branch
      %231 = sbr.rel (%p229) target = $region32
    $region31: #{tpu_custom_call.1} parent=5 // pred_region
      // Predicated region
      $region33: #{tpu_custom_call.1} parent=31 // pred_check
        %p232 = pneg %p33
      $region34: #{tpu_custom_call.1} parent=31 // pred_check_branch
        %234 = sbr.rel (%p232) target = $region36
      $region35: #{tpu_custom_call.1} parent=31 // pred_region
        %s235 = smul.u32 13, %s13
        %p236 = scmp.lt.s32.totalorder %s235, 25
        %s237 = scalar_select %p236, %s235, 25
        %s238 = smul.addr %s237, 8
        %s239 = scalar_lea.vmem %s0, %s238
        %s240 = smul.u32 13, %s13
      $region36: #{tpu_custom_call.1} parent=31 // pred_fallthru
        _
      // Predicated region
      $region37: #{tpu_custom_call.1} parent=31 // pred_check
        %p241 = pneg %p59
      $region38: #{tpu_custom_call.1} parent=31 // pred_check_branch
        %243 = sbr.rel (%p241) target = $region40
      $region39: #{tpu_custom_call.1} parent=31 // pred_region
        %s244 = smul.u32 13, %s13
        %p245 = scmp.lt.s32.totalorder %s244, 25
        %s246 = scalar_select %p245, %s244, 25
        %s247 = smul.addr %s246, 8
        %s248 = scalar_lea.vmem %s1, %s247
        %s249 = smul.u32 13, %s13
      $region40: #{tpu_custom_call.1} parent=31 // pred_fallthru
        _
      // Predicated region
      $region41: #{tpu_custom_call.1} parent=31 // pred_check
        %p250 = pneg %p85
      $region42: #{tpu_custom_call.1} parent=31 // pred_check_branch
        %252 = sbr.rel (%p250) target = $region44
      $region43: #{tpu_custom_call.1} parent=31 // pred_region
        %s253 = smul.u32 13, %s13
        %p254 = scmp.lt.s32.totalorder %s253, 25
        %s255 = scalar_select %p254, %s253, 25
        %s256 = smul.addr %s255, 8
        %s257 = scalar_lea.vmem %s2, %s256
        %s258 = smul.u32 13, %s13
      $region44: #{tpu_custom_call.1} parent=31 // pred_fallthru
        _
    $region32: #{tpu_custom_call.1} parent=5 // pred_fallthru
      _
    %p259 = scmp.le.s32.totalorder 1, %s13
    %p260 = scmp.lt.s32.totalorder %s13, 3
    %p261 = pnand %p259, %p260
    %p262 = pneg %p261
    // Predicated region
    $region45: #{tpu_custom_call.1} parent=5 // pred_check
      _
    $region46: #{tpu_custom_call.1} parent=5 // pred_check_branch
      %264 = sbr.rel (%p261) target = $region48
    $region47: #{tpu_custom_call.1} parent=5 // pred_region
      %s265 = ssub.s32 %s13, 1
      %s266 = smul.u32 13, %s18
      %p267 = scmp.lt.s32.totalorder %s266, 25
      %s268 = scalar_select %p267, %s266, 25
      %s269 = smul.addr %s268, 8
      %s270 = scalar_lea.vmem %s0, %s269
      %p271 = pneg %p39
      %p272 = pneg %p36
      %s273 = smul.u32 13, %s18
      %p274 = scmp.lt.s32.totalorder %s273, 25
      %s275 = scalar_select %p274, %s273, 25
      %s276 = smul.addr %s275, 8
      %s277 = scalar_lea.vmem %s1, %s276
      %p278 = pneg %p65
      %p279 = pneg %p62
      %s280 = smul.u32 13, %s18
      %p281 = scmp.lt.s32.totalorder %s280, 25
      %s282 = scalar_select %p281, %s280, 25
      %s283 = smul.addr %s282, 8
      %s284 = scalar_lea.vmem %s2, %s283
      %p285 = pneg %p91
      %p286 = pneg %p88
      %p287 = pneg %p112
      %p288 = pneg %p109
      %p289 = pneg %p133
      %p290 = pneg %p130
      %p291 = pneg %p154
      %p292 = pneg %p151
      %p293 = pneg %p175
      %p294 = pneg %p172
      %p295 = pneg %p201
      %p296 = pneg %p198
      %s297 = smul.u32 13, %s18
      %p298 = scmp.lt.s32.totalorder %s297, 25
      %s299 = scalar_select %p298, %s297, 25
      %s300 = smul.addr %s299, 8
      %s301 = scalar_lea.vmem %s7, %s300
      %s302 = smul.u32 13, %s18
      %p303 = scmp.lt.s32.totalorder %s302, 25
      %s304 = scalar_select %p303, %s302, 25
      %s305 = smul.addr %s304, 8
      %s306 = scalar_lea.vmem %s0, %s305
      %s307 = smul.u32 13, %s18
      %s308 = smul.u32 13, %s18
      %p309 = scmp.lt.s32.totalorder %s308, 25
      %s310 = scalar_select %p309, %s308, 25
      %s311 = smul.addr %s310, 8
      %s312 = scalar_lea.vmem %s1, %s311
      %s313 = smul.u32 13, %s18
      %s314 = smul.u32 13, %s18
      %p315 = scmp.lt.s32.totalorder %s314, 25
      %s316 = scalar_select %p315, %s314, 25
      %s317 = smul.addr %s316, 8
      %s318 = scalar_lea.vmem %s2, %s317
      %s319 = smul.u32 13, %s18
      %s320 = smul.u32 13, %s18
      %p321 = scmp.lt.s32.totalorder %s320, 25
      %s322 = scalar_select %p321, %s320, 25
      %s323 = smul.addr %s322, 8
      %s324 = scalar_lea.vmem %s7, %s323
      %s325 = smul.u32 13, %s18
      %v326 = vld [vmem:[%s306] sm:$0xff]
      %v327 = vld [vmem:[%s306 + $0x8] sm:$0xff]
      %v328 = vld [vmem:[%s306 + $0x10] sm:$0xff]
      %v329 = vld [vmem:[%s306 + $0x18] sm:$0xff]
      %v330 = vld [vmem:[%s306 + $0x20] sm:$0xff]
      %v331 = vld [vmem:[%s306 + $0x28] sm:$0xff]
      %v332 = vld [vmem:[%s306 + $0x30] sm:$0xff]
      %v333 = vld [vmem:[%s306 + $0x38] sm:$0xff]
      %v334 = vld [vmem:[%s306 + $0x40] sm:$0xff]
      %v335 = vld [vmem:[%s306 + $0x48] sm:$0xff]
      %v336 = vld [vmem:[%s306 + $0x50] sm:$0xff]
      %v337 = vld [vmem:[%s306 + $0x58] sm:$0xff]
      %v338 = vld [vmem:[%s306 + $0x60] sm:$0xff]
      %v339 = vld [vmem:[%s312] sm:$0xff]
      %v340 = vld [vmem:[%s312 + $0x8] sm:$0xff]
      %v341 = vld [vmem:[%s312 + $0x10] sm:$0xff]
      %v342 = vld [vmem:[%s312 + $0x18] sm:$0xff]
      %v343 = vld [vmem:[%s312 + $0x20] sm:$0xff]
      %v344 = vld [vmem:[%s312 + $0x28] sm:$0xff]
      %v345 = vld [vmem:[%s312 + $0x30] sm:$0xff]
      %v346 = vld [vmem:[%s312 + $0x38] sm:$0xff]
      %v347 = vld [vmem:[%s312 + $0x40] sm:$0xff]
      %v348 = vld [vmem:[%s312 + $0x48] sm:$0xff]
      %v349 = vld [vmem:[%s312 + $0x50] sm:$0xff]
      %v350 = vld [vmem:[%s312 + $0x58] sm:$0xff]
      %v351 = vld [vmem:[%s312 + $0x60] sm:$0xff]
      %v352 = vld [vmem:[%s318] sm:$0xff]
      %v353 = vld [vmem:[%s318 + $0x8] sm:$0xff]
      %v354 = vld [vmem:[%s318 + $0x10] sm:$0xff]
      %v355 = vld [vmem:[%s318 + $0x18] sm:$0xff]
      %v356 = vld [vmem:[%s318 + $0x20] sm:$0xff]
      %v357 = vld [vmem:[%s318 + $0x28] sm:$0xff]
      %v358 = vld [vmem:[%s318 + $0x30] sm:$0xff]
      %v359 = vld [vmem:[%s318 + $0x38] sm:$0xff]
      %v360 = vld [vmem:[%s318 + $0x40] sm:$0xff]
      %v361 = vld [vmem:[%s318 + $0x48] sm:$0xff]
      %v362 = vld [vmem:[%s318 + $0x50] sm:$0xff]
      %v363 = vld [vmem:[%s318 + $0x58] sm:$0xff]
      %v364 = vld [vmem:[%s318 + $0x60] sm:$0xff]
      %v365 = vld [vmem:[%s3] sm:$0xff]
      %v366 = vld [vmem:[%s3 + $0x8] sm:$0xff]
      %v367 = vld [vmem:[%s3 + $0x10] sm:$0xff]
      %v368 = vld [vmem:[%s3 + $0x18] sm:$0xff]
      %v369 = vld [vmem:[%s3 + $0x20] sm:$0xff]
      %v370 = vld [vmem:[%s3 + $0x28] sm:$0xff]
      %v371 = vld [vmem:[%s3 + $0x30] sm:$0xff]
      %v372 = vld [vmem:[%s3 + $0x38] sm:$0xff]
      %vm373 = vcmask 261120
      %v375 = vsel %vm373, %v339, 0
      %v378 = vsel %vm373, %v340, 0
      %v381 = vsel %vm373, %v341, 0
      %v384 = vsel %vm373, %v342, 0
      %v387 = vsel %vm373, %v343, 0
      %v390 = vsel %vm373, %v344, 0
      %v393 = vsel %vm373, %v345, 0
      %v396 = vsel %vm373, %v346, 0
      %v399 = vsel %vm373, %v347, 0
      %v402 = vsel %vm373, %v348, 0
      %v405 = vsel %vm373, %v349, 0
      %v408 = vsel %vm373, %v350, 0
      %v411 = vsel %vm373, %v351, 0
      %413 = vmatprep.subr.mxu0 0.0
      %414 = vmatpush1.msra.mxu0 0.0
      %415 = vmatprep.subr.mxu0 0.0
      %416 = vmatpush1.msra.mxu0 0.0
      %417 = vmatprep.subr.mxu0 0.0
      %418 = vmatpush1.msra.mxu0 0.0
      %419 = vmatprep.subr.mxu0 0.0
      %420 = vmatpush1.msra.mxu0 0.0
      %421 = vmatprep.subr.mxu0 0.0
      %422 = vmatpush1.msra.mxu0 0.0
      %423 = vmatprep.subr.mxu0 0.0
      %424 = vmatpush1.msra.mxu0 0.0
      %425 = vmatprep.subr.mxu0 0.0
      %426 = vmatpush1.msra.mxu0 0.0
      %427 = vmatprep.subr.mxu0 0.0
      %428 = vmatpush1.msra.mxu0 0.0
      %429 = vmatprep.subr.mxu0 0.0
      %430 = vmatpush1.msra.mxu0 0.0
      %431 = vmatprep.subr.mxu0 0.0
      %432 = vmatpush1.msra.mxu0 0.0
      %433 = vmatprep.subr.mxu0 0.0
      %434 = vmatpush1.msra.mxu0 0.0
      %435 = vmatprep.subr.mxu0 0.0
      %436 = vmatpush1.msra.mxu0 0.0
      %437 = vmatprep.subr.mxu0 0.0
      %438 = vmatpush1.msra.mxu0 %v372
      %439 = vmatprep.subr.mxu0 0.0
      %440 = vmatpush1.msra.mxu0 %v371
      %441 = vmatprep.subr.mxu0 0.0
      %442 = vmatpush1.msra.mxu0 %v370
      %443 = vmatprep.subr.mxu0 0.0
      %444 = vmatpush1.msra.mxu0 %v369
      %445 = vmatprep.subr.mxu0 0.0
      %446 = vmatpush2.msra.mxu0 0.0
      %447 = vmatprep.subr.mxu0 0.0
      %448 = vmatpush2.msra.mxu0 0.0
      %449 = vmatprep.subr.mxu0 0.0
      %450 = vmatpush2.msra.mxu0 0.0
      %451 = vmatprep.subr.mxu0 0.0
      %452 = vmatpush2.msra.mxu0 0.0
      %453 = vmatprep.subr.mxu0 0.0
      %454 = vmatpush2.msra.mxu0 0.0
      %455 = vmatprep.subr.mxu0 0.0
      %456 = vmatpush2.msra.mxu0 0.0
      %457 = vmatprep.subr.mxu0 0.0
      %458 = vmatpush2.msra.mxu0 0.0
      %459 = vmatprep.subr.mxu0 0.0
      %460 = vmatpush2.msra.mxu0 0.0
      %461 = vmatprep.subr.mxu0 0.0
      %462 = vmatpush2.msra.mxu0 0.0
      %463 = vmatprep.subr.mxu0 0.0
      %464 = vmatpush2.msra.mxu0 0.0
      %465 = vmatprep.subr.mxu0 0.0
      %466 = vmatpush2.msra.mxu0 0.0
      %467 = vmatprep.subr.mxu0 0.0
      %468 = vmatpush2.msra.mxu0 0.0
      %469 = vmatprep.subr.mxu0 0.0
      %470 = vmatpush2.msra.mxu0 0.0
      %471 = vmatprep.subr.mxu0 0.0
      %472 = vmatpush2.msra.mxu0 0.0
      %473 = vmatprep.subr.mxu0 0.0
      %474 = vmatpush2.msra.mxu0 0.0
      %475 = vmatprep.subr.mxu0 0.0
      %476 = vmatpush2.msra.mxu0 0.0
      %477 = vmatprep.mubr.f32.mxu0 0.0
      %478 = vmatmul.mubr.f32.gmra.mxu0 %v375
      %v479 = vpop.f32.mrf.mxu0
      %v480 = vadd.f32 0.0, %v479
      %v481 = vpop.f32.mrf.mxu0
      %482 = vmatprep.mubr.f32.mxu0 0.0
      %483 = vmatmul.mubr.f32.gmra.mxu0 %v378
      %v484 = vpop.f32.mrf.mxu0
      %v485 = vadd.f32 0.0, %v484
      %v486 = vpop.f32.mrf.mxu0
      %487 = vmatprep.mubr.f32.mxu0 0.0
      %488 = vmatmul.mubr.f32.gmra.mxu0 %v381
      %v489 = vpop.f32.mrf.mxu0
      %v490 = vadd.f32 0.0, %v489
      %v491 = vpop.f32.mrf.mxu0
      %492 = vmatprep.mubr.f32.mxu0 0.0
      %493 = vmatmul.mubr.f32.gmra.mxu0 %v384
      %v494 = vpop.f32.mrf.mxu0
      %v495 = vadd.f32 0.0, %v494
      %v496 = vpop.f32.mrf.mxu0
      %497 = vmatprep.mubr.f32.mxu0 0.0
      %498 = vmatmul.mubr.f32.gmra.mxu0 %v387
      %v499 = vpop.f32.mrf.mxu0
      %v500 = vadd.f32 0.0, %v499
      %v501 = vpop.f32.mrf.mxu0
      %502 = vmatprep.mubr.f32.mxu0 0.0
      %503 = vmatmul.mubr.f32.gmra.mxu0 %v390
      %v504 = vpop.f32.mrf.mxu0
      %v505 = vadd.f32 0.0, %v504
      %v506 = vpop.f32.mrf.mxu0
      %507 = vmatprep.mubr.f32.mxu0 0.0
      %508 = vmatmul.mubr.f32.gmra.mxu0 %v393
      %v509 = vpop.f32.mrf.mxu0
      %v510 = vadd.f32 0.0, %v509
      %v511 = vpop.f32.mrf.mxu0
      %512 = vmatprep.mubr.f32.mxu0 0.0
      %513 = vmatmul.mubr.f32.gmra.mxu0 %v396
      %v514 = vpop.f32.mrf.mxu0
      %v515 = vadd.f32 0.0, %v514
      %v516 = vpop.f32.mrf.mxu0
      %517 = vmatprep.mubr.f32.mxu0 0.0
      %518 = vmatmul.mubr.f32.gmra.mxu0 %v399
      %v519 = vpop.f32.mrf.mxu0
      %v520 = vadd.f32 0.0, %v519
      %v521 = vpop.f32.mrf.mxu0
      %522 = vmatprep.mubr.f32.mxu0 0.0
      %523 = vmatmul.mubr.f32.gmra.mxu0 %v402
      %v524 = vpop.f32.mrf.mxu0
      %v525 = vadd.f32 0.0, %v524
      %v526 = vpop.f32.mrf.mxu0
      %527 = vmatprep.mubr.f32.mxu0 0.0
      %528 = vmatmul.mubr.f32.gmra.mxu0 %v405
      %v529 = vpop.f32.mrf.mxu0
      %v530 = vadd.f32 0.0, %v529
      %v531 = vpop.f32.mrf.mxu0
      %532 = vmatprep.mubr.f32.mxu0 0.0
      %533 = vmatmul.mubr.f32.gmra.mxu0 %v408
      %v534 = vpop.f32.mrf.mxu0
      %v535 = vadd.f32 0.0, %v534
      %v536 = vpop.f32.mrf.mxu0
      %537 = vmatprep.mubr.f32.mxu0 0.0
      %538 = vmatmul.mubr.f32.gmra.mxu0 %v411
      %v539 = vpop.f32.mrf.mxu0
      %v540 = vadd.f32 0.0, %v539
      %v541 = vpop.f32.mrf.mxu0
      %542 = vdwg.mxu0
      %v544 = vsel %vm373, %v326, 0
      %v547 = vsel %vm373, %v327, 0
      %v550 = vsel %vm373, %v328, 0
      %v553 = vsel %vm373, %v329, 0
      %v556 = vsel %vm373, %v330, 0
      %v559 = vsel %vm373, %v331, 0
      %v562 = vsel %vm373, %v332, 0
      %v565 = vsel %vm373, %v333, 0
      %v568 = vsel %vm373, %v334, 0
      %v571 = vsel %vm373, %v335, 0
      %v574 = vsel %vm373, %v336, 0
      %v577 = vsel %vm373, %v337, 0
      %v580 = vsel %vm373, %v338, 0
      %582 = vmatprep.subr.mxu0 0.0
      %583 = vmatpush1.msra.mxu0 0.0
      %584 = vmatprep.subr.mxu0 0.0
      %585 = vmatpush1.msra.mxu0 0.0
      %586 = vmatprep.subr.mxu0 0.0
      %587 = vmatpush1.msra.mxu0 0.0
      %588 = vmatprep.subr.mxu0 0.0
      %589 = vmatpush1.msra.mxu0 0.0
      %590 = vmatprep.subr.mxu0 0.0
      %591 = vmatpush1.msra.mxu0 0.0
      %592 = vmatprep.subr.mxu0 0.0
      %593 = vmatpush1.msra.mxu0 0.0
      %594 = vmatprep.subr.mxu0 0.0
      %595 = vmatpush1.msra.mxu0 0.0
      %596 = vmatprep.subr.mxu0 0.0
      %597 = vmatpush1.msra.mxu0 0.0
      %598 = vmatprep.subr.mxu0 0.0
      %599 = vmatpush1.msra.mxu0 0.0
      %600 = vmatprep.subr.mxu0 0.0
      %601 = vmatpush1.msra.mxu0 0.0
      %602 = vmatprep.subr.mxu0 0.0
      %603 = vmatpush1.msra.mxu0 0.0
      %604 = vmatprep.subr.mxu0 0.0
      %605 = vmatpush1.msra.mxu0 0.0
      %606 = vmatprep.subr.mxu0 0.0
      %607 = vmatpush1.msra.mxu0 %v368
      %608 = vmatprep.subr.mxu0 0.0
      %609 = vmatpush1.msra.mxu0 %v367
      %610 = vmatprep.subr.mxu0 0.0
      %611 = vmatpush1.msra.mxu0 %v366
      %612 = vmatprep.subr.mxu0 0.0
      %613 = vmatpush1.msra.mxu0 %v365
      %614 = vmatprep.subr.mxu0 0.0
      %615 = vmatpush2.msra.mxu0 0.0
      %616 = vmatprep.subr.mxu0 0.0
      %617 = vmatpush2.msra.mxu0 0.0
      %618 = vmatprep.subr.mxu0 0.0
      %619 = vmatpush2.msra.mxu0 0.0
      %620 = vmatprep.subr.mxu0 0.0
      %621 = vmatpush2.msra.mxu0 0.0
      %622 = vmatprep.subr.mxu0 0.0
      %623 = vmatpush2.msra.mxu0 0.0
      %624 = vmatprep.subr.mxu0 0.0
      %625 = vmatpush2.msra.mxu0 0.0
      %626 = vmatprep.subr.mxu0 0.0
      %627 = vmatpush2.msra.mxu0 0.0
      %628 = vmatprep.subr.mxu0 0.0
      %629 = vmatpush2.msra.mxu0 0.0
      %630 = vmatprep.subr.mxu0 0.0
      %631 = vmatpush2.msra.mxu0 0.0
      %632 = vmatprep.subr.mxu0 0.0
      %633 = vmatpush2.msra.mxu0 0.0
      %634 = vmatprep.subr.mxu0 0.0
      %635 = vmatpush2.msra.mxu0 0.0
      %636 = vmatprep.subr.mxu0 0.0
      %637 = vmatpush2.msra.mxu0 0.0
      %638 = vmatprep.subr.mxu0 0.0
      %639 = vmatpush2.msra.mxu0 0.0
      %640 = vmatprep.subr.mxu0 0.0
      %641 = vmatpush2.msra.mxu0 0.0
      %642 = vmatprep.subr.mxu0 0.0
      %643 = vmatpush2.msra.mxu0 0.0
      %644 = vmatprep.subr.mxu0 0.0
      %645 = vmatpush2.msra.mxu0 0.0
      %646 = vmatprep.mubr.f32.mxu0 0.0
      %647 = vmatmul.mubr.f32.gmra.mxu0 %v544
      %v648 = vpop.f32.mrf.mxu0
      %v649 = vadd.f32 %v480, %v648
      %v650 = vpop.f32.mrf.mxu0
      %651 = vmatprep.mubr.f32.mxu0 0.0
      %652 = vmatmul.mubr.f32.gmra.mxu0 %v547
      %v653 = vpop.f32.mrf.mxu0
      %v654 = vadd.f32 %v485, %v653
      %v655 = vpop.f32.mrf.mxu0
      %656 = vmatprep.mubr.f32.mxu0 0.0
      %657 = vmatmul.mubr.f32.gmra.mxu0 %v550
      %v658 = vpop.f32.mrf.mxu0
      %v659 = vadd.f32 %v490, %v658
      %v660 = vpop.f32.mrf.mxu0
      %661 = vmatprep.mubr.f32.mxu0 0.0
      %662 = vmatmul.mubr.f32.gmra.mxu0 %v553
      %v663 = vpop.f32.mrf.mxu0
      %v664 = vadd.f32 %v495, %v663
      %v665 = vpop.f32.mrf.mxu0
      %666 = vmatprep.mubr.f32.mxu0 0.0
      %667 = vmatmul.mubr.f32.gmra.mxu0 %v556
      %v668 = vpop.f32.mrf.mxu0
      %v669 = vadd.f32 %v500, %v668
      %v670 = vpop.f32.mrf.mxu0
      %671 = vmatprep.mubr.f32.mxu0 0.0
      %672 = vmatmul.mubr.f32.gmra.mxu0 %v559
      %v673 = vpop.f32.mrf.mxu0
      %v674 = vadd.f32 %v505, %v673
      %v675 = vpop.f32.mrf.mxu0
      %676 = vmatprep.mubr.f32.mxu0 0.0
      %677 = vmatmul.mubr.f32.gmra.mxu0 %v562
      %v678 = vpop.f32.mrf.mxu0
      %v679 = vadd.f32 %v510, %v678
      %v680 = vpop.f32.mrf.mxu0
      %681 = vmatprep.mubr.f32.mxu0 0.0
      %682 = vmatmul.mubr.f32.gmra.mxu0 %v565
      %v683 = vpop.f32.mrf.mxu0
      %v684 = vadd.f32 %v515, %v683
      %v685 = vpop.f32.mrf.mxu0
      %686 = vmatprep.mubr.f32.mxu0 0.0
      %687 = vmatmul.mubr.f32.gmra.mxu0 %v568
      %v688 = vpop.f32.mrf.mxu0
      %v689 = vadd.f32 %v520, %v688
      %v690 = vpop.f32.mrf.mxu0
      %691 = vmatprep.mubr.f32.mxu0 0.0
      %692 = vmatmul.mubr.f32.gmra.mxu0 %v571
      %v693 = vpop.f32.mrf.mxu0
      %v694 = vadd.f32 %v525, %v693
      %v695 = vpop.f32.mrf.mxu0
      %696 = vmatprep.mubr.f32.mxu0 0.0
      %697 = vmatmul.mubr.f32.gmra.mxu0 %v574
      %v698 = vpop.f32.mrf.mxu0
      %v699 = vadd.f32 %v530, %v698
      %v700 = vpop.f32.mrf.mxu0
      %701 = vmatprep.mubr.f32.mxu0 0.0
      %702 = vmatmul.mubr.f32.gmra.mxu0 %v577
      %v703 = vpop.f32.mrf.mxu0
      %v704 = vadd.f32 %v535, %v703
      %v705 = vpop.f32.mrf.mxu0
      %706 = vmatprep.mubr.f32.mxu0 0.0
      %707 = vmatmul.mubr.f32.gmra.mxu0 %v580
      %v708 = vpop.f32.mrf.mxu0
      %v709 = vadd.f32 %v540, %v708
      %v710 = vpop.f32.mrf.mxu0
      %711 = vdwg.mxu0
      %v712 = vld [vmem:[%s3 + $0x40] sm:$0xff]
      %v713 = vld [vmem:[%s3 + $0x48] sm:$0xff]
      %v714 = vld [vmem:[%s3 + $0x50] sm:$0xff]
      %v715 = vld [vmem:[%s3 + $0x58] sm:$0xff]
      %v717 = vsel %vm373, %v352, 0
      %v720 = vsel %vm373, %v353, 0
      %v723 = vsel %vm373, %v354, 0
      %v726 = vsel %vm373, %v355, 0
      %v729 = vsel %vm373, %v356, 0
      %v732 = vsel %vm373, %v357, 0
      %v735 = vsel %vm373, %v358, 0
      %v738 = vsel %vm373, %v359, 0
      %v741 = vsel %vm373, %v360, 0
      %v744 = vsel %vm373, %v361, 0
      %v747 = vsel %vm373, %v362, 0
      %v750 = vsel %vm373, %v363, 0
      %v753 = vsel %vm373, %v364, 0
      %755 = vmatprep.subr.mxu0 0.0
      %756 = vmatpush1.msra.mxu0 0.0
      %757 = vmatprep.subr.mxu0 0.0
      %758 = vmatpush1.msra.mxu0 0.0
      %759 = vmatprep.subr.mxu0 0.0
      %760 = vmatpush1.msra.mxu0 0.0
      %761 = vmatprep.subr.mxu0 0.0
      %762 = vmatpush1.msra.mxu0 0.0
      %763 = vmatprep.subr.mxu0 0.0
      %764 = vmatpush1.msra.mxu0 0.0
      %765 = vmatprep.subr.mxu0 0.0
      %766 = vmatpush1.msra.mxu0 0.0
      %767 = vmatprep.subr.mxu0 0.0
      %768 = vmatpush1.msra.mxu0 0.0
      %769 = vmatprep.subr.mxu0 0.0
      %770 = vmatpush1.msra.mxu0 0.0
      %771 = vmatprep.subr.mxu0 0.0
      %772 = vmatpush1.msra.mxu0 0.0
      %773 = vmatprep.subr.mxu0 0.0
      %774 = vmatpush1.msra.mxu0 0.0
      %775 = vmatprep.subr.mxu0 0.0
      %776 = vmatpush1.msra.mxu0 0.0
      %777 = vmatprep.subr.mxu0 0.0
      %778 = vmatpush1.msra.mxu0 0.0
      %779 = vmatprep.subr.mxu0 0.0
      %780 = vmatpush1.msra.mxu0 %v715
      %781 = vmatprep.subr.mxu0 0.0
      %782 = vmatpush1.msra.mxu0 %v714
      %783 = vmatprep.subr.mxu0 0.0
      %784 = vmatpush1.msra.mxu0 %v713
      %785 = vmatprep.subr.mxu0 0.0
      %786 = vmatpush1.msra.mxu0 %v712
      %787 = vmatprep.subr.mxu0 0.0
      %788 = vmatpush2.msra.mxu0 0.0
      %789 = vmatprep.subr.mxu0 0.0
      %790 = vmatpush2.msra.mxu0 0.0
      %791 = vmatprep.subr.mxu0 0.0
      %792 = vmatpush2.msra.mxu0 0.0
      %793 = vmatprep.subr.mxu0 0.0
      %794 = vmatpush2.msra.mxu0 0.0
      %795 = vmatprep.subr.mxu0 0.0
      %796 = vmatpush2.msra.mxu0 0.0
      %797 = vmatprep.subr.mxu0 0.0
      %798 = vmatpush2.msra.mxu0 0.0
      %799 = vmatprep.subr.mxu0 0.0
      %800 = vmatpush2.msra.mxu0 0.0
      %801 = vmatprep.subr.mxu0 0.0
      %802 = vmatpush2.msra.mxu0 0.0
      %803 = vmatprep.subr.mxu0 0.0
      %804 = vmatpush2.msra.mxu0 0.0
      %805 = vmatprep.subr.mxu0 0.0
      %806 = vmatpush2.msra.mxu0 0.0
      %807 = vmatprep.subr.mxu0 0.0
      %808 = vmatpush2.msra.mxu0 0.0
      %809 = vmatprep.subr.mxu0 0.0
      %810 = vmatpush2.msra.mxu0 0.0
      %811 = vmatprep.subr.mxu0 0.0
      %812 = vmatpush2.msra.mxu0 0.0
      %813 = vmatprep.subr.mxu0 0.0
      %814 = vmatpush2.msra.mxu0 0.0
      %815 = vmatprep.subr.mxu0 0.0
      %816 = vmatpush2.msra.mxu0 0.0
      %817 = vmatprep.subr.mxu0 0.0
      %818 = vmatpush2.msra.mxu0 0.0
      %819 = vmatprep.mubr.f32.mxu0 0.0
      %820 = vmatmul.mubr.f32.gmra.mxu0 %v717
      %v821 = vpop.f32.mrf.mxu0
      %v822 = vadd.f32 0.0, %v821
      %v823 = vpop.f32.mrf.mxu0
      %824 = vmatprep.mubr.f32.mxu0 0.0
      %825 = vmatmul.mubr.f32.gmra.mxu0 %v720
      %v826 = vpop.f32.mrf.mxu0
      %v827 = vadd.f32 0.0, %v826
      %v828 = vpop.f32.mrf.mxu0
      %829 = vmatprep.mubr.f32.mxu0 0.0
      %830 = vmatmul.mubr.f32.gmra.mxu0 %v723
      %v831 = vpop.f32.mrf.mxu0
      %v832 = vadd.f32 0.0, %v831
      %v833 = vpop.f32.mrf.mxu0
      %834 = vmatprep.mubr.f32.mxu0 0.0
      %835 = vmatmul.mubr.f32.gmra.mxu0 %v726
      %v836 = vpop.f32.mrf.mxu0
      %v837 = vadd.f32 0.0, %v836
      %v838 = vpop.f32.mrf.mxu0
      %839 = vmatprep.mubr.f32.mxu0 0.0
      %840 = vmatmul.mubr.f32.gmra.mxu0 %v729
      %v841 = vpop.f32.mrf.mxu0
      %v842 = vadd.f32 0.0, %v841
      %v843 = vpop.f32.mrf.mxu0
      %844 = vmatprep.mubr.f32.mxu0 0.0
      %845 = vmatmul.mubr.f32.gmra.mxu0 %v732
      %v846 = vpop.f32.mrf.mxu0
      %v847 = vadd.f32 0.0, %v846
      %v848 = vpop.f32.mrf.mxu0
      %849 = vmatprep.mubr.f32.mxu0 0.0
      %850 = vmatmul.mubr.f32.gmra.mxu0 %v735
      %v851 = vpop.f32.mrf.mxu0
      %v852 = vadd.f32 0.0, %v851
      %v853 = vpop.f32.mrf.mxu0
      %854 = vmatprep.mubr.f32.mxu0 0.0
      %855 = vmatmul.mubr.f32.gmra.mxu0 %v738
      %v856 = vpop.f32.mrf.mxu0
      %v857 = vadd.f32 0.0, %v856
      %v858 = vpop.f32.mrf.mxu0
      %859 = vmatprep.mubr.f32.mxu0 0.0
      %860 = vmatmul.mubr.f32.gmra.mxu0 %v741
      %v861 = vpop.f32.mrf.mxu0
      %v862 = vadd.f32 0.0, %v861
      %v863 = vpop.f32.mrf.mxu0
      %864 = vmatprep.mubr.f32.mxu0 0.0
      %865 = vmatmul.mubr.f32.gmra.mxu0 %v744
      %v866 = vpop.f32.mrf.mxu0
      %v867 = vadd.f32 0.0, %v866
      %v868 = vpop.f32.mrf.mxu0
      %869 = vmatprep.mubr.f32.mxu0 0.0
      %870 = vmatmul.mubr.f32.gmra.mxu0 %v747
      %v871 = vpop.f32.mrf.mxu0
      %v872 = vadd.f32 0.0, %v871
      %v873 = vpop.f32.mrf.mxu0
      %874 = vmatprep.mubr.f32.mxu0 0.0
      %875 = vmatmul.mubr.f32.gmra.mxu0 %v750
      %v876 = vpop.f32.mrf.mxu0
      %v877 = vadd.f32 0.0, %v876
      %v878 = vpop.f32.mrf.mxu0
      %879 = vmatprep.mubr.f32.mxu0 0.0
      %880 = vmatmul.mubr.f32.gmra.mxu0 %v753
      %v881 = vpop.f32.mrf.mxu0
      %v882 = vadd.f32 0.0, %v881
      %v883 = vpop.f32.mrf.mxu0
      %884 = vdwg.mxu0
      %v885 = vadd.f32 %v649, %v822
      %v886 = vadd.f32 %v654, %v827
      %v887 = vadd.f32 %v659, %v832
      %v888 = vadd.f32 %v664, %v837
      %v889 = vadd.f32 %v669, %v842
      %v890 = vadd.f32 %v674, %v847
      %v891 = vadd.f32 %v679, %v852
      %v892 = vadd.f32 %v684, %v857
      %v893 = vadd.f32 %v689, %v862
      %v894 = vadd.f32 %v694, %v867
      %v895 = vadd.f32 %v699, %v872
      %v896 = vadd.f32 %v704, %v877
      %v897 = vadd.f32 %v709, %v882
      %v898 = vld [vmem:[%s4] sm:$0x1]
      %v900 = vlaneseq
      %v901 = vshrl.u32 %v900, 7
      %v902 = vsub.s32 0, %v901
      %v903 = vrot.slane %v898, %v902
      %v905 = vadd.f32 %v885, %v903
      %v906 = vadd.f32 %v886, %v903
      %v907 = vadd.f32 %v887, %v903
      %v908 = vadd.f32 %v888, %v903
      %v909 = vadd.f32 %v889, %v903
      %v910 = vadd.f32 %v890, %v903
      %v911 = vadd.f32 %v891, %v903
      %v912 = vadd.f32 %v892, %v903
      %v913 = vadd.f32 %v893, %v903
      %v914 = vadd.f32 %v894, %v903
      %v915 = vadd.f32 %v895, %v903
      %v916 = vadd.f32 %v896, %v903
      %v917 = vadd.f32 %v897, %v903
      %v918 = vtanh.pop %v905
      %v919 = vtanh.pop %v906
      %v920 = vtanh.pop %v907
      %v921 = vtanh.pop %v908
      %v922 = vtanh.pop %v909
      %v923 = vtanh.pop %v910
      %v924 = vtanh.pop %v911
      %v925 = vtanh.pop %v912
      %v926 = vtanh.pop %v913
      %v927 = vtanh.pop %v914
      %v928 = vtanh.pop %v915
      %v929 = vtanh.pop %v916
      %v930 = vtanh.pop %v917
      %v931 = vld [vmem:[%s5] sm:$0xff]
      %v932 = vld [vmem:[%s5 + $0x8] sm:$0xff]
      %v933 = vld [vmem:[%s5 + $0x10] sm:$0xff]
      %v934 = vld [vmem:[%s5 + $0x18] sm:$0xff]
      %v935 = vld [vmem:[%s5 + $0x20] sm:$0xff]
      %v936 = vld [vmem:[%s5 + $0x28] sm:$0xff]
      %v937 = vld [vmem:[%s5 + $0x30] sm:$0xff]
      %v938 = vld [vmem:[%s5 + $0x38] sm:$0xff]
      %939 = vmatprep.subr.mxu0 0.0
      %940 = vmatpush1.msra.mxu0 0.0
      %941 = vmatprep.subr.mxu0 0.0
      %942 = vmatpush1.msra.mxu0 0.0
      %943 = vmatprep.subr.mxu0 0.0
      %944 = vmatpush1.msra.mxu0 0.0
      %945 = vmatprep.subr.mxu0 0.0
      %946 = vmatpush1.msra.mxu0 0.0
      %947 = vmatprep.subr.mxu0 0.0
      %948 = vmatpush1.msra.mxu0 0.0
      %949 = vmatprep.subr.mxu0 0.0
      %950 = vmatpush1.msra.mxu0 0.0
      %951 = vmatprep.subr.mxu0 0.0
      %952 = vmatpush1.msra.mxu0 0.0
      %953 = vmatprep.subr.mxu0 0.0
      %954 = vmatpush1.msra.mxu0 0.0
      %955 = vmatprep.subr.mxu0 0.0
      %956 = vmatpush1.msra.mxu0 0.0
      %957 = vmatprep.subr.mxu0 0.0
      %958 = vmatpush1.msra.mxu0 0.0
      %959 = vmatprep.subr.mxu0 0.0
      %960 = vmatpush1.msra.mxu0 0.0
      %961 = vmatprep.subr.mxu0 0.0
      %962 = vmatpush1.msra.mxu0 0.0
      %963 = vmatprep.subr.mxu0 0.0
      %964 = vmatpush1.msra.mxu0 %v938
      %965 = vmatprep.subr.mxu0 0.0
      %966 = vmatpush1.msra.mxu0 %v937
      %967 = vmatprep.subr.mxu0 0.0
      %968 = vmatpush1.msra.mxu0 %v936
      %969 = vmatprep.subr.mxu0 0.0
      %970 = vmatpush1.msra.mxu0 %v935
      %971 = vmatprep.subr.mxu0 0.0
      %972 = vmatpush2.msra.mxu0 0.0
      %973 = vmatprep.subr.mxu0 0.0
      %974 = vmatpush2.msra.mxu0 0.0
      %975 = vmatprep.subr.mxu0 0.0
      %976 = vmatpush2.msra.mxu0 0.0
      %977 = vmatprep.subr.mxu0 0.0
      %978 = vmatpush2.msra.mxu0 0.0
      %979 = vmatprep.subr.mxu0 0.0
      %980 = vmatpush2.msra.mxu0 0.0
      %981 = vmatprep.subr.mxu0 0.0
      %982 = vmatpush2.msra.mxu0 0.0
      %983 = vmatprep.subr.mxu0 0.0
      %984 = vmatpush2.msra.mxu0 0.0
      %985 = vmatprep.subr.mxu0 0.0
      %986 = vmatpush2.msra.mxu0 0.0
      %987 = vmatprep.subr.mxu0 0.0
      %988 = vmatpush2.msra.mxu0 0.0
      %989 = vmatprep.subr.mxu0 0.0
      %990 = vmatpush2.msra.mxu0 0.0
      %991 = vmatprep.subr.mxu0 0.0
      %992 = vmatpush2.msra.mxu0 0.0
      %993 = vmatprep.subr.mxu0 0.0
      %994 = vmatpush2.msra.mxu0 0.0
      %995 = vmatprep.subr.mxu0 0.0
      %996 = vmatpush2.msra.mxu0 0.0
      %997 = vmatprep.subr.mxu0 0.0
      %998 = vmatpush2.msra.mxu0 0.0
      %999 = vmatprep.subr.mxu0 0.0
      %1000 = vmatpush2.msra.mxu0 0.0
      %1001 = vmatprep.subr.mxu0 0.0
      %1002 = vmatpush2.msra.mxu0 0.0
      %1003 = vmatprep.mubr.f32.mxu0 0.0
      %1004 = vmatmul.mubr.f32.gmra.mxu0 %v375
      %v1005 = vpop.f32.mrf.mxu0
      %v1006 = vadd.f32 0.0, %v1005
      %v1007 = vpop.f32.mrf.mxu0
      %1008 = vmatprep.mubr.f32.mxu0 0.0
      %1009 = vmatmul.mubr.f32.gmra.mxu0 %v378
      %v1010 = vpop.f32.mrf.mxu0
      %v1011 = vadd.f32 0.0, %v1010
      %v1012 = vpop.f32.mrf.mxu0
      %1013 = vmatprep.mubr.f32.mxu0 0.0
      %1014 = vmatmul.mubr.f32.gmra.mxu0 %v381
      %v1015 = vpop.f32.mrf.mxu0
      %v1016 = vadd.f32 0.0, %v1015
      %v1017 = vpop.f32.mrf.mxu0
      %1018 = vmatprep.mubr.f32.mxu0 0.0
      %1019 = vmatmul.mubr.f32.gmra.mxu0 %v384
      %v1020 = vpop.f32.mrf.mxu0
      %v1021 = vadd.f32 0.0, %v1020
      %v1022 = vpop.f32.mrf.mxu0
      %1023 = vmatprep.mubr.f32.mxu0 0.0
      %1024 = vmatmul.mubr.f32.gmra.mxu0 %v387
      %v1025 = vpop.f32.mrf.mxu0
      %v1026 = vadd.f32 0.0, %v1025
      %v1027 = vpop.f32.mrf.mxu0
      %1028 = vmatprep.mubr.f32.mxu0 0.0
      %1029 = vmatmul.mubr.f32.gmra.mxu0 %v390
      %v1030 = vpop.f32.mrf.mxu0
      %v1031 = vadd.f32 0.0, %v1030
      %v1032 = vpop.f32.mrf.mxu0
      %1033 = vmatprep.mubr.f32.mxu0 0.0
      %1034 = vmatmul.mubr.f32.gmra.mxu0 %v393
      %v1035 = vpop.f32.mrf.mxu0
      %v1036 = vadd.f32 0.0, %v1035
      %v1037 = vpop.f32.mrf.mxu0
      %1038 = vmatprep.mubr.f32.mxu0 0.0
      %1039 = vmatmul.mubr.f32.gmra.mxu0 %v396
      %v1040 = vpop.f32.mrf.mxu0
      %v1041 = vadd.f32 0.0, %v1040
      %v1042 = vpop.f32.mrf.mxu0
      %1043 = vmatprep.mubr.f32.mxu0 0.0
      %1044 = vmatmul.mubr.f32.gmra.mxu0 %v399
      %v1045 = vpop.f32.mrf.mxu0
      %v1046 = vadd.f32 0.0, %v1045
      %v1047 = vpop.f32.mrf.mxu0
      %1048 = vmatprep.mubr.f32.mxu0 0.0
      %1049 = vmatmul.mubr.f32.gmra.mxu0 %v402
      %v1050 = vpop.f32.mrf.mxu0
      %v1051 = vadd.f32 0.0, %v1050
      %v1052 = vpop.f32.mrf.mxu0
      %1053 = vmatprep.mubr.f32.mxu0 0.0
      %1054 = vmatmul.mubr.f32.gmra.mxu0 %v405
      %v1055 = vpop.f32.mrf.mxu0
      %v1056 = vadd.f32 0.0, %v1055
      %v1057 = vpop.f32.mrf.mxu0
      %1058 = vmatprep.mubr.f32.mxu0 0.0
      %1059 = vmatmul.mubr.f32.gmra.mxu0 %v408
      %v1060 = vpop.f32.mrf.mxu0
      %v1061 = vadd.f32 0.0, %v1060
      %v1062 = vpop.f32.mrf.mxu0
      %1063 = vmatprep.mubr.f32.mxu0 0.0
      %1064 = vmatmul.mubr.f32.gmra.mxu0 %v411
      %v1065 = vpop.f32.mrf.mxu0
      %v1066 = vadd.f32 0.0, %v1065
      %v1067 = vpop.f32.mrf.mxu0
      %1068 = vdwg.mxu0
      %1069 = vmatprep.subr.mxu0 0.0
      %1070 = vmatpush1.msra.mxu0 0.0
      %1071 = vmatprep.subr.mxu0 0.0
      %1072 = vmatpush1.msra.mxu0 0.0
      %1073 = vmatprep.subr.mxu0 0.0
      %1074 = vmatpush1.msra.mxu0 0.0
      %1075 = vmatprep.subr.mxu0 0.0
      %1076 = vmatpush1.msra.mxu0 0.0
      %1077 = vmatprep.subr.mxu0 0.0
      %1078 = vmatpush1.msra.mxu0 0.0
      %1079 = vmatprep.subr.mxu0 0.0
      %1080 = vmatpush1.msra.mxu0 0.0
      %1081 = vmatprep.subr.mxu0 0.0
      %1082 = vmatpush1.msra.mxu0 0.0
      %1083 = vmatprep.subr.mxu0 0.0
      %1084 = vmatpush1.msra.mxu0 0.0
      %1085 = vmatprep.subr.mxu0 0.0
      %1086 = vmatpush1.msra.mxu0 0.0
      %1087 = vmatprep.subr.mxu0 0.0
      %1088 = vmatpush1.msra.mxu0 0.0
      %1089 = vmatprep.subr.mxu0 0.0
      %1090 = vmatpush1.msra.mxu0 0.0
      %1091 = vmatprep.subr.mxu0 0.0
      %1092 = vmatpush1.msra.mxu0 0.0
      %1093 = vmatprep.subr.mxu0 0.0
      %1094 = vmatpush1.msra.mxu0 %v934
      %1095 = vmatprep.subr.mxu0 0.0
      %1096 = vmatpush1.msra.mxu0 %v933
      %1097 = vmatprep.subr.mxu0 0.0
      %1098 = vmatpush1.msra.mxu0 %v932
      %1099 = vmatprep.subr.mxu0 0.0
      %1100 = vmatpush1.msra.mxu0 %v931
      %1101 = vmatprep.subr.mxu0 0.0
      %1102 = vmatpush2.msra.mxu0 0.0
      %1103 = vmatprep.subr.mxu0 0.0
      %1104 = vmatpush2.msra.mxu0 0.0
      %1105 = vmatprep.subr.mxu0 0.0
      %1106 = vmatpush2.msra.mxu0 0.0
      %1107 = vmatprep.subr.mxu0 0.0
      %1108 = vmatpush2.msra.mxu0 0.0
      %1109 = vmatprep.subr.mxu0 0.0
      %1110 = vmatpush2.msra.mxu0 0.0
      %1111 = vmatprep.subr.mxu0 0.0
      %1112 = vmatpush2.msra.mxu0 0.0
      %1113 = vmatprep.subr.mxu0 0.0
      %1114 = vmatpush2.msra.mxu0 0.0
      %1115 = vmatprep.subr.mxu0 0.0
      %1116 = vmatpush2.msra.mxu0 0.0
      %1117 = vmatprep.subr.mxu0 0.0
      %1118 = vmatpush2.msra.mxu0 0.0
      %1119 = vmatprep.subr.mxu0 0.0
      %1120 = vmatpush2.msra.mxu0 0.0
      %1121 = vmatprep.subr.mxu0 0.0
      %1122 = vmatpush2.msra.mxu0 0.0
      %1123 = vmatprep.subr.mxu0 0.0
      %1124 = vmatpush2.msra.mxu0 0.0
      %1125 = vmatprep.subr.mxu0 0.0
      %1126 = vmatpush2.msra.mxu0 0.0
      %1127 = vmatprep.subr.mxu0 0.0
      %1128 = vmatpush2.msra.mxu0 0.0
      %1129 = vmatprep.subr.mxu0 0.0
      %1130 = vmatpush2.msra.mxu0 0.0
      %1131 = vmatprep.subr.mxu0 0.0
      %1132 = vmatpush2.msra.mxu0 0.0
      %1133 = vmatprep.mubr.f32.mxu0 0.0
      %1134 = vmatmul.mubr.f32.gmra.mxu0 %v544
      %v1135 = vpop.f32.mrf.mxu0
      %v1136 = vadd.f32 %v1006, %v1135
      %v1137 = vpop.f32.mrf.mxu0
      %1138 = vmatprep.mubr.f32.mxu0 0.0
      %1139 = vmatmul.mubr.f32.gmra.mxu0 %v547
      %v1140 = vpop.f32.mrf.mxu0
      %v1141 = vadd.f32 %v1011, %v1140
      %v1142 = vpop.f32.mrf.mxu0
      %1143 = vmatprep.mubr.f32.mxu0 0.0
      %1144 = vmatmul.mubr.f32.gmra.mxu0 %v550
      %v1145 = vpop.f32.mrf.mxu0
      %v1146 = vadd.f32 %v1016, %v1145
      %v1147 = vpop.f32.mrf.mxu0
      %1148 = vmatprep.mubr.f32.mxu0 0.0
      %1149 = vmatmul.mubr.f32.gmra.mxu0 %v553
      %v1150 = vpop.f32.mrf.mxu0
      %v1151 = vadd.f32 %v1021, %v1150
      %v1152 = vpop.f32.mrf.mxu0
      %1153 = vmatprep.mubr.f32.mxu0 0.0
      %1154 = vmatmul.mubr.f32.gmra.mxu0 %v556
      %v1155 = vpop.f32.mrf.mxu0
      %v1156 = vadd.f32 %v1026, %v1155
      %v1157 = vpop.f32.mrf.mxu0
      %1158 = vmatprep.mubr.f32.mxu0 0.0
      %1159 = vmatmul.mubr.f32.gmra.mxu0 %v559
      %v1160 = vpop.f32.mrf.mxu0
      %v1161 = vadd.f32 %v1031, %v1160
      %v1162 = vpop.f32.mrf.mxu0
      %1163 = vmatprep.mubr.f32.mxu0 0.0
      %1164 = vmatmul.mubr.f32.gmra.mxu0 %v562
      %v1165 = vpop.f32.mrf.mxu0
      %v1166 = vadd.f32 %v1036, %v1165
      %v1167 = vpop.f32.mrf.mxu0
      %1168 = vmatprep.mubr.f32.mxu0 0.0
      %1169 = vmatmul.mubr.f32.gmra.mxu0 %v565
      %v1170 = vpop.f32.mrf.mxu0
      %v1171 = vadd.f32 %v1041, %v1170
      %v1172 = vpop.f32.mrf.mxu0
      %1173 = vmatprep.mubr.f32.mxu0 0.0
      %1174 = vmatmul.mubr.f32.gmra.mxu0 %v568
      %v1175 = vpop.f32.mrf.mxu0
      %v1176 = vadd.f32 %v1046, %v1175
      %v1177 = vpop.f32.mrf.mxu0
      %1178 = vmatprep.mubr.f32.mxu0 0.0
      %1179 = vmatmul.mubr.f32.gmra.mxu0 %v571
      %v1180 = vpop.f32.mrf.mxu0
      %v1181 = vadd.f32 %v1051, %v1180
      %v1182 = vpop.f32.mrf.mxu0
      %1183 = vmatprep.mubr.f32.mxu0 0.0
      %1184 = vmatmul.mubr.f32.gmra.mxu0 %v574
      %v1185 = vpop.f32.mrf.mxu0
      %v1186 = vadd.f32 %v1056, %v1185
      %v1187 = vpop.f32.mrf.mxu0
      %1188 = vmatprep.mubr.f32.mxu0 0.0
      %1189 = vmatmul.mubr.f32.gmra.mxu0 %v577
      %v1190 = vpop.f32.mrf.mxu0
      %v1191 = vadd.f32 %v1061, %v1190
      %v1192 = vpop.f32.mrf.mxu0
      %1193 = vmatprep.mubr.f32.mxu0 0.0
      %1194 = vmatmul.mubr.f32.gmra.mxu0 %v580
      %v1195 = vpop.f32.mrf.mxu0
      %v1196 = vadd.f32 %v1066, %v1195
      %v1197 = vpop.f32.mrf.mxu0
      %1198 = vdwg.mxu0
      %v1199 = vld [vmem:[%s5 + $0x40] sm:$0xff]
      %v1200 = vld [vmem:[%s5 + $0x48] sm:$0xff]
      %v1201 = vld [vmem:[%s5 + $0x50] sm:$0xff]
      %v1202 = vld [vmem:[%s5 + $0x58] sm:$0xff]
      %1203 = vmatprep.subr.mxu0 0.0
      %1204 = vmatpush1.msra.mxu0 0.0
      %1205 = vmatprep.subr.mxu0 0.0
      %1206 = vmatpush1.msra.mxu0 0.0
      %1207 = vmatprep.subr.mxu0 0.0
      %1208 = vmatpush1.msra.mxu0 0.0
      %1209 = vmatprep.subr.mxu0 0.0
      %1210 = vmatpush1.msra.mxu0 0.0
      %1211 = vmatprep.subr.mxu0 0.0
      %1212 = vmatpush1.msra.mxu0 0.0
      %1213 = vmatprep.subr.mxu0 0.0
      %1214 = vmatpush1.msra.mxu0 0.0
      %1215 = vmatprep.subr.mxu0 0.0
      %1216 = vmatpush1.msra.mxu0 0.0
      %1217 = vmatprep.subr.mxu0 0.0
      %1218 = vmatpush1.msra.mxu0 0.0
      %1219 = vmatprep.subr.mxu0 0.0
      %1220 = vmatpush1.msra.mxu0 0.0
      %1221 = vmatprep.subr.mxu0 0.0
      %1222 = vmatpush1.msra.mxu0 0.0
      %1223 = vmatprep.subr.mxu0 0.0
      %1224 = vmatpush1.msra.mxu0 0.0
      %1225 = vmatprep.subr.mxu0 0.0
      %1226 = vmatpush1.msra.mxu0 0.0
      %1227 = vmatprep.subr.mxu0 0.0
      %1228 = vmatpush1.msra.mxu0 %v1202
      %1229 = vmatprep.subr.mxu0 0.0
      %1230 = vmatpush1.msra.mxu0 %v1201
      %1231 = vmatprep.subr.mxu0 0.0
      %1232 = vmatpush1.msra.mxu0 %v1200
      %1233 = vmatprep.subr.mxu0 0.0
      %1234 = vmatpush1.msra.mxu0 %v1199
      %1235 = vmatprep.subr.mxu0 0.0
      %1236 = vmatpush2.msra.mxu0 0.0
      %1237 = vmatprep.subr.mxu0 0.0
      %1238 = vmatpush2.msra.mxu0 0.0
      %1239 = vmatprep.subr.mxu0 0.0
      %1240 = vmatpush2.msra.mxu0 0.0
      %1241 = vmatprep.subr.mxu0 0.0
      %1242 = vmatpush2.msra.mxu0 0.0
      %1243 = vmatprep.subr.mxu0 0.0
      %1244 = vmatpush2.msra.mxu0 0.0
      %1245 = vmatprep.subr.mxu0 0.0
      %1246 = vmatpush2.msra.mxu0 0.0
      %1247 = vmatprep.subr.mxu0 0.0
      %1248 = vmatpush2.msra.mxu0 0.0
      %1249 = vmatprep.subr.mxu0 0.0
      %1250 = vmatpush2.msra.mxu0 0.0
      %1251 = vmatprep.subr.mxu0 0.0
      %1252 = vmatpush2.msra.mxu0 0.0
      %1253 = vmatprep.subr.mxu0 0.0
      %1254 = vmatpush2.msra.mxu0 0.0
      %1255 = vmatprep.subr.mxu0 0.0
      %1256 = vmatpush2.msra.mxu0 0.0
      %1257 = vmatprep.subr.mxu0 0.0
      %1258 = vmatpush2.msra.mxu0 0.0
      %1259 = vmatprep.subr.mxu0 0.0
      %1260 = vmatpush2.msra.mxu0 0.0
      %1261 = vmatprep.subr.mxu0 0.0
      %1262 = vmatpush2.msra.mxu0 0.0
      %1263 = vmatprep.subr.mxu0 0.0
      %1264 = vmatpush2.msra.mxu0 0.0
      %1265 = vmatprep.subr.mxu0 0.0
      %1266 = vmatpush2.msra.mxu0 0.0
      %1267 = vmatprep.mubr.f32.mxu0 0.0
      %1268 = vmatmul.mubr.f32.gmra.mxu0 %v717
      %v1269 = vpop.f32.mrf.mxu0
      %v1270 = vadd.f32 0.0, %v1269
      %v1271 = vpop.f32.mrf.mxu0
      %1272 = vmatprep.mubr.f32.mxu0 0.0
      %1273 = vmatmul.mubr.f32.gmra.mxu0 %v720
      %v1274 = vpop.f32.mrf.mxu0
      %v1275 = vadd.f32 0.0, %v1274
      %v1276 = vpop.f32.mrf.mxu0
      %1277 = vmatprep.mubr.f32.mxu0 0.0
      %1278 = vmatmul.mubr.f32.gmra.mxu0 %v723
      %v1279 = vpop.f32.mrf.mxu0
      %v1280 = vadd.f32 0.0, %v1279
      %v1281 = vpop.f32.mrf.mxu0
      %1282 = vmatprep.mubr.f32.mxu0 0.0
      %1283 = vmatmul.mubr.f32.gmra.mxu0 %v726
      %v1284 = vpop.f32.mrf.mxu0
      %v1285 = vadd.f32 0.0, %v1284
      %v1286 = vpop.f32.mrf.mxu0
      %1287 = vmatprep.mubr.f32.mxu0 0.0
      %1288 = vmatmul.mubr.f32.gmra.mxu0 %v729
      %v1289 = vpop.f32.mrf.mxu0
      %v1290 = vadd.f32 0.0, %v1289
      %v1291 = vpop.f32.mrf.mxu0
      %1292 = vmatprep.mubr.f32.mxu0 0.0
      %1293 = vmatmul.mubr.f32.gmra.mxu0 %v732
      %v1294 = vpop.f32.mrf.mxu0
      %v1295 = vadd.f32 0.0, %v1294
      %v1296 = vpop.f32.mrf.mxu0
      %1297 = vmatprep.mubr.f32.mxu0 0.0
      %1298 = vmatmul.mubr.f32.gmra.mxu0 %v735
      %v1299 = vpop.f32.mrf.mxu0
      %v1300 = vadd.f32 0.0, %v1299
      %v1301 = vpop.f32.mrf.mxu0
      %1302 = vmatprep.mubr.f32.mxu0 0.0
      %1303 = vmatmul.mubr.f32.gmra.mxu0 %v738
      %v1304 = vpop.f32.mrf.mxu0
      %v1305 = vadd.f32 0.0, %v1304
      %v1306 = vpop.f32.mrf.mxu0
      %1307 = vmatprep.mubr.f32.mxu0 0.0
      %1308 = vmatmul.mubr.f32.gmra.mxu0 %v741
      %v1309 = vpop.f32.mrf.mxu0
      %v1310 = vadd.f32 0.0, %v1309
      %v1311 = vpop.f32.mrf.mxu0
      %1312 = vmatprep.mubr.f32.mxu0 0.0
      %1313 = vmatmul.mubr.f32.gmra.mxu0 %v744
      %v1314 = vpop.f32.mrf.mxu0
      %v1315 = vadd.f32 0.0, %v1314
      %v1316 = vpop.f32.mrf.mxu0
      %1317 = vmatprep.mubr.f32.mxu0 0.0
      %1318 = vmatmul.mubr.f32.gmra.mxu0 %v747
      %v1319 = vpop.f32.mrf.mxu0
      %v1320 = vadd.f32 0.0, %v1319
      %v1321 = vpop.f32.mrf.mxu0
      %1322 = vmatprep.mubr.f32.mxu0 0.0
      %1323 = vmatmul.mubr.f32.gmra.mxu0 %v750
      %v1324 = vpop.f32.mrf.mxu0
      %v1325 = vadd.f32 0.0, %v1324
      %v1326 = vpop.f32.mrf.mxu0
      %1327 = vmatprep.mubr.f32.mxu0 0.0
      %1328 = vmatmul.mubr.f32.gmra.mxu0 %v753
      %v1329 = vpop.f32.mrf.mxu0
      %v1330 = vadd.f32 0.0, %v1329
      %v1331 = vpop.f32.mrf.mxu0
      %1332 = vdwg.mxu0
      %v1333 = vadd.f32 %v1136, %v1270
      %v1334 = vadd.f32 %v1141, %v1275
      %v1335 = vadd.f32 %v1146, %v1280
      %v1336 = vadd.f32 %v1151, %v1285
      %v1337 = vadd.f32 %v1156, %v1290
      %v1338 = vadd.f32 %v1161, %v1295
      %v1339 = vadd.f32 %v1166, %v1300
      %v1340 = vadd.f32 %v1171, %v1305
      %v1341 = vadd.f32 %v1176, %v1310
      %v1342 = vadd.f32 %v1181, %v1315
      %v1343 = vadd.f32 %v1186, %v1320
      %v1344 = vadd.f32 %v1191, %v1325
      %v1345 = vadd.f32 %v1196, %v1330
      %v1346 = vld [vmem:[%s6] sm:$0x1]
      %v1348 = vlaneseq
      %v1349 = vshrl.u32 %v1348, 7
      %v1350 = vsub.s32 0, %v1349
      %v1351 = vrot.slane %v1346, %v1350
      %v1353 = vadd.f32 %v1333, %v1351
      %v1354 = vadd.f32 %v1334, %v1351
      %v1355 = vadd.f32 %v1335, %v1351
      %v1356 = vadd.f32 %v1336, %v1351
      %v1357 = vadd.f32 %v1337, %v1351
      %v1358 = vadd.f32 %v1338, %v1351
      %v1359 = vadd.f32 %v1339, %v1351
      %v1360 = vadd.f32 %v1340, %v1351
      %v1361 = vadd.f32 %v1341, %v1351
      %v1362 = vadd.f32 %v1342, %v1351
      %v1363 = vadd.f32 %v1343, %v1351
      %v1364 = vadd.f32 %v1344, %v1351
      %v1365 = vadd.f32 %v1345, %v1351
      %v1366 = vxor.u32 %v1353, 2147483648
      %v1367 = vxor.u32 %v1354, 2147483648
      %v1368 = vxor.u32 %v1355, 2147483648
      %v1369 = vxor.u32 %v1356, 2147483648
      %v1370 = vxor.u32 %v1357, 2147483648
      %v1371 = vxor.u32 %v1358, 2147483648
      %v1372 = vxor.u32 %v1359, 2147483648
      %v1373 = vxor.u32 %v1360, 2147483648
      %v1374 = vxor.u32 %v1361, 2147483648
      %v1375 = vxor.u32 %v1362, 2147483648
      %v1376 = vxor.u32 %v1363, 2147483648
      %v1377 = vxor.u32 %v1364, 2147483648
      %v1378 = vxor.u32 %v1365, 2147483648
      %v1379 = vmul.f32 %v1366, 1.442695
      %v1380 = vpow.pop %v1379
      %v1381 = vmul.f32 %v1367, 1.442695
      %v1382 = vpow.pop %v1381
      %v1383 = vmul.f32 %v1368, 1.442695
      %v1384 = vpow.pop %v1383
      %v1385 = vmul.f32 %v1369, 1.442695
      %v1386 = vpow.pop %v1385
      %v1387 = vmul.f32 %v1370, 1.442695
      %v1388 = vpow.pop %v1387
      %v1389 = vmul.f32 %v1371, 1.442695
      %v1390 = vpow.pop %v1389
      %v1391 = vmul.f32 %v1372, 1.442695
      %v1392 = vpow.pop %v1391
      %v1393 = vmul.f32 %v1373, 1.442695
      %v1394 = vpow.pop %v1393
      %v1395 = vmul.f32 %v1374, 1.442695
      %v1396 = vpow.pop %v1395
      %v1397 = vmul.f32 %v1375, 1.442695
      %v1398 = vpow.pop %v1397
      %v1399 = vmul.f32 %v1376, 1.442695
      %v1400 = vpow.pop %v1399
      %v1401 = vmul.f32 %v1377, 1.442695
      %v1402 = vpow.pop %v1401
      %v1403 = vmul.f32 %v1378, 1.442695
      %v1404 = vpow.pop %v1403
      %v1405 = vadd.f32 %v1380, 1.0
      %v1406 = vadd.f32 %v1382, 1.0
      %v1407 = vadd.f32 %v1384, 1.0
      %v1408 = vadd.f32 %v1386, 1.0
      %v1409 = vadd.f32 %v1388, 1.0
      %v1410 = vadd.f32 %v1390, 1.0
      %v1411 = vadd.f32 %v1392, 1.0
      %v1412 = vadd.f32 %v1394, 1.0
      %v1413 = vadd.f32 %v1396, 1.0
      %v1414 = vadd.f32 %v1398, 1.0
      %v1415 = vadd.f32 %v1400, 1.0
      %v1416 = vadd.f32 %v1402, 1.0
      %v1417 = vadd.f32 %v1404, 1.0
      %v1418 = vrcp.pop %v1405
      %v1419 = vmul.f32 1.0, %v1418
      %v1420 = vrcp.pop %v1406
      %v1421 = vmul.f32 1.0, %v1420
      %v1422 = vrcp.pop %v1407
      %v1423 = vmul.f32 1.0, %v1422
      %v1424 = vrcp.pop %v1408
      %v1425 = vmul.f32 1.0, %v1424
      %v1426 = vrcp.pop %v1409
      %v1427 = vmul.f32 1.0, %v1426
      %v1428 = vrcp.pop %v1410
      %v1429 = vmul.f32 1.0, %v1428
      %v1430 = vrcp.pop %v1411
      %v1431 = vmul.f32 1.0, %v1430
      %v1432 = vrcp.pop %v1412
      %v1433 = vmul.f32 1.0, %v1432
      %v1434 = vrcp.pop %v1413
      %v1435 = vmul.f32 1.0, %v1434
      %v1436 = vrcp.pop %v1414
      %v1437 = vmul.f32 1.0, %v1436
      %v1438 = vrcp.pop %v1415
      %v1439 = vmul.f32 1.0, %v1438
      %v1440 = vrcp.pop %v1416
      %v1441 = vmul.f32 1.0, %v1440
      %v1442 = vrcp.pop %v1417
      %v1443 = vmul.f32 1.0, %v1442
      %v1444 = vmul.f32 %v918, %v1419
      %v1445 = vmul.f32 %v919, %v1421
      %v1446 = vmul.f32 %v920, %v1423
      %v1447 = vmul.f32 %v921, %v1425
      %v1448 = vmul.f32 %v922, %v1427
      %v1449 = vmul.f32 %v923, %v1429
      %v1450 = vmul.f32 %v924, %v1431
      %v1451 = vmul.f32 %v925, %v1433
      %v1452 = vmul.f32 %v926, %v1435
      %v1453 = vmul.f32 %v927, %v1437
      %v1454 = vmul.f32 %v928, %v1439
      %v1455 = vmul.f32 %v929, %v1441
      %v1456 = vmul.f32 %v930, %v1443
      %1457 = vst.msk [vmem:[%s324] sm:$0xff] %vm373, %v1444
      %1458 = vst.msk [vmem:[%s324 + $0x8] sm:$0xff] %vm373, %v1445
      %1459 = vst.msk [vmem:[%s324 + $0x10] sm:$0xff] %vm373, %v1446
      %1460 = vst.msk [vmem:[%s324 + $0x18] sm:$0xff] %vm373, %v1447
      %1461 = vst.msk [vmem:[%s324 + $0x20] sm:$0xff] %vm373, %v1448
      %1462 = vst.msk [vmem:[%s324 + $0x28] sm:$0xff] %vm373, %v1449
      %1463 = vst.msk [vmem:[%s324 + $0x30] sm:$0xff] %vm373, %v1450
      %1464 = vst.msk [vmem:[%s324 + $0x38] sm:$0xff] %vm373, %v1451
      %1465 = vst.msk [vmem:[%s324 + $0x40] sm:$0xff] %vm373, %v1452
      %1466 = vst.msk [vmem:[%s324 + $0x48] sm:$0xff] %vm373, %v1453
      %1467 = vst.msk [vmem:[%s324 + $0x50] sm:$0xff] %vm373, %v1454
      %1468 = vst.msk [vmem:[%s324 + $0x58] sm:$0xff] %vm373, %v1455
      %1469 = vst.msk [vmem:[%s324 + $0x60] sm:$0xff] %vm373, %v1456
      %s1470 = smul.u32 13, %s18
      %p1471 = scmp.lt.s32.totalorder %s1470, 25
      %s1472 = scalar_select %p1471, %s1470, 25
      %s1473 = smul.addr %s1472, 8
      %s1474 = scalar_lea.vmem %s7, %s1473
      // Predicated region
      $region49: #{tpu_custom_call.1} parent=47 // pred_check
        %p1475 = pneg %p198
      $region50: #{tpu_custom_call.1} parent=47 // pred_check_branch
        %1477 = sbr.rel (%p1475) target = $region52
      $region51: #{tpu_custom_call.1} parent=47 // pred_region
        %s1478 = smul.u32 13, %s18
      $region52: #{tpu_custom_call.1} parent=47 // pred_fallthru
        _
    $region48: #{tpu_custom_call.1} parent=5 // pred_fallthru
      _
    %p1479 = scmp.le.s32.totalorder 2, %s13
    // Predicated region
    $region53: #{tpu_custom_call.1} parent=5 // pred_check
      %p1480 = pneg %p1479
    $region54: #{tpu_custom_call.1} parent=5 // pred_check_branch
      %1482 = sbr.rel (%p1480) target = $region56
    $region55: #{tpu_custom_call.1} parent=5 // pred_region
      %s1483 = ssub.s32 %s13, 2
      // Predicated region
      $region57: #{tpu_custom_call.1} parent=55 // pred_check
        %p1484 = pneg %p204
      $region58: #{tpu_custom_call.1} parent=55 // pred_check_branch
        %1486 = sbr.rel (%p1484) target = $region60
      $region59: #{tpu_custom_call.1} parent=55 // pred_region
        %s1487 = smul.u32 13, %s19
        %p1488 = scmp.lt.s32.totalorder %s1487, 25
        %s1489 = scalar_select %p1488, %s1487, 25
        %s1490 = smul.addr %s1489, 8
        %s1491 = scalar_lea.vmem %s7, %s1490
      $region60: #{tpu_custom_call.1} parent=55 // pred_fallthru
        _
    $region56: #{tpu_custom_call.1} parent=5 // pred_fallthru
      _
  $region6: #{tpu_custom_call.1} parent=0 // loop_footer
    %s17 = sadd.s32 1, %s13
  $region7: #{tpu_custom_call.1} parent=0 // loop_footer_branch
    %12 = sbr.rel target = $region3
  $region8: #{tpu_custom_call.1} parent=0 // loop_exit
    _

</llo_original>
